<compile_context>
chip_gen: v7x
topology: tpu7x:2x2x1
jax: 0.10.0
libtpu: 0.0.40
codegen_flags: <defaults>
</compile_context>

<pallas_src>
import functools

import jax
import jax.numpy as jnp
from jax.experimental import pallas as pl
from jax.experimental.pallas import tpu as pltpu

# ---------------- configuration (mirrors Involution2d defaults) ----------------
IN_CH = 4
OUT_CH = 8
KH, KW = 7, 7                  # kernel_size
STRIDE = (1, 1)                # stride (defaults; o_mapping AvgPool(1,1) == identity)
GROUPS = 1
REDUCE_RATIO = 1
DIL = (1, 1)                   # dilation
PAD = (3, 3)                   # padding
BN_EPS = 1e-5
LANE = 128

assert STRIDE == (1, 1), "demo implements the default stride=(1,1) path"
# "same" horizontal geometry (ow == w) is what lets the unfold become a flat lane shift:
assert 2 * PAD[1] == DIL[1] * (KW - 1), "flattened-shift unfold assumes ow == w"
# TODO(synk): general stride path (AvgPool o_mapping + strided unfold) not wired up.


# ---------------- Pallas kernel: in-kernel unfold + involution MAC ----------------
def _involution_kernel(xflat_ref, ker_ref, out_ref, *, kh, kw, dil, ow, p_len, n_acc):
    # xflat_ref: (G, c_per_g, L)  vertically padded, initial-mapped image, rows flattened
    #                             lane-dense (front-padded by PAD_w zeros).
    # ker_ref:   (G, K, P)        per-pixel involution kernel, horizontal-pad mask folded in.
    # out_ref:   (G, c_per_g, P)
    g_total, c_per_g, _ = xflat_ref.shape
    for g in range(g_total):
        xg = xflat_ref.at[g]                       # (c_per_g, L) ref-view, no load
        kg = ker_ref.at[g]                         # (K, P) ref-view
        x = xg[...].astype(jnp.float32)            # ~3 vregs, reused by all 49 taps
        # Independent partial accumulators break the serial acc += a*b chain (4 VALU slots).
        accs = [jnp.zeros((c_per_g, p_len), jnp.float32) for _ in range(n_acc)]
        for k in range(kh * kw):
            ih, iw = divmod(k, kw)
            shift = ih * dil[0] * ow + iw * dil[1]          # static lane offset
            patch = x[:, shift:shift + p_len]               # static lane-window slice (XLU)
            krow = kg[pl.ds(k, 1), :].astype(jnp.float32)   # (1, P); broadcasts over sublanes
            accs[k % n_acc] = accs[k % n_acc] + patch * krow
        acc = accs[0]
        for a in accs[1:]:
            acc = acc + a
        out_ref[g] = acc.astype(out_ref.dtype)              # single dense (unmasked) store


def involution_core(x_flat, ker, *, ow):
    """x_flat: (B, G, c_per_g, L); ker: (B, G, K, P_pad) -> (B, G, c_per_g, P_pad)."""
    b, n_groups, c_per_g, l_total = x_flat.shape
    _, _, k_total, p_pad = ker.shape
    kernel_fn = functools.partial(_involution_kernel, kh=KH, kw=KW, dil=DIL,
                                  ow=ow, p_len=p_pad, n_acc=4)
    return pl.pallas_call(
        kernel_fn,
        out_shape=jax.ShapeDtypeStruct((b, n_groups, c_per_g, p_pad), x_flat.dtype),
        grid=(b,),
        in_specs=[
            pl.BlockSpec((None, n_groups, c_per_g, l_total), lambda bi: (bi, 0, 0, 0)),
            pl.BlockSpec((None, n_groups, k_total, p_pad), lambda bi: (bi, 0, 0, 0)),
        ],
        out_specs=pl.BlockSpec((None, n_groups, c_per_g, p_pad), lambda bi: (bi, 0, 0, 0)),
        compiler_params=pltpu.CompilerParams(
            dimension_semantics=("parallel",),
            vmem_limit_bytes=32 * 1024 * 1024),
    )(x_flat, ker)


# ---------------- plain-JAX glue (1x1 convs, BN+ReLU, kernel-generation) ----------------
def conv1x1(x, w):
    # x: (B, Cin, H, W), w: (Cout, Cin)  ->  (B, Cout, H, W)
    return jnp.einsum('oc,bchw->bohw', w, x)


def batchnorm_relu(x, gamma, beta, eps=BN_EPS):
    # PyTorch BatchNorm2d in (default) training mode: batch statistics over (N, H, W).
    mean = x.mean(axis=(0, 2, 3), keepdims=True)
    var = x.var(axis=(0, 2, 3), keepdims=True)            # biased variance
    xn = (x - mean) / jnp.sqrt(var + eps)
    y = xn * gamma[None, :, None, None] + beta[None, :, None, None]
    return jnp.maximum(y, 0.0)


def kernel_generation_path(x, params, oh, ow):
    # o_mapping = AvgPool2d(kernel=stride, stride=stride); identity for stride (1,1).
    r = conv1x1(x, params['w_reduce'])                    # (B, OUT_CH//rr, H, W)
    s = batchnorm_relu(r, params['bn_gamma'], params['bn_beta'])
    k = conv1x1(s, params['w_span'])                      # (B, K*G, oh, ow)
    b = x.shape[0]
    return k.reshape(b, GROUPS, KH * KW, oh * ow)         # (B, G, K, P) lane-dense P


def involution2d_forward(x, params):
    b, cin, h, w = x.shape
    oh = (h + 2 * PAD[0] - DIL[0] * (KH - 1) - 1) // STRIDE[0] + 1
    ow = (w + 2 * PAD[1] - DIL[1] * (KW - 1) - 1) // STRIDE[1] + 1
    assert ow == w, "flattened-shift unfold assumes ow == w (default config)"
    p = oh * ow
    p_pad = ((p + LANE - 1) // LANE) * LANE               # lane-dense last dim
    c_per_g = OUT_CH // GROUPS

    # initial mapping (1x1 conv if in_channels != out_channels, else identity)
    xi = conv1x1(x, params['w_init']) if IN_CH != OUT_CH else x      # (B, OUT_CH, H, W)

    # Vertical zero-pad only; flatten rows lane-dense.  Horizontal zero-padding is handled
    # by the validity mask folded into ker below, so patch(ih,iw)[p] = x_flat[p + ih*w + iw].
    x_vpad = jnp.pad(xi, ((0, 0), (0, 0), (PAD[0], PAD[0]), (0, 0)))
    hp = h + 2 * PAD[0]
    x_vflat = x_vpad.reshape(b, GROUPS, c_per_g, hp * w)
    max_shift = (KH - 1) * DIL[0] * ow + (KW - 1) * DIL[1]
    l_needed = max(p_pad + max_shift, PAD[1] + hp * w)
    l_total = ((l_needed + LANE - 1) // LANE) * LANE
    x_flat = jnp.pad(x_vflat,
                     ((0, 0), (0, 0), (0, 0), (PAD[1], l_total - PAD[1] - hp * w)))

    # Per-pixel involution kernel, (B, G, K, P), with the horizontal-pad mask folded in.
    ker = kernel_generation_path(x, params, oh, ow)                  # (B, G, K, P)
    col = jnp.arange(ow)
    off = jnp.arange(KW) * DIL[1] - PAD[1]
    valid_w = ((col[None, :] + off[:, None]) >= 0) & ((col[None, :] + off[:, None]) < w)
    valid = jnp.broadcast_to(valid_w[None, :, None, :], (KH, KW, oh, ow))
    valid = valid.reshape(KH * KW, p).astype(ker.dtype)
    ker = ker * valid[None, None, :, :]
    if p_pad != p:
        ker = jnp.pad(ker, ((0, 0), (0, 0), (0, 0), (0, p_pad - p)))

    out = involution_core(x_flat, ker, ow=ow)                        # (B, G, c_per_g, P_pad)
    return out[..., :p].reshape(b, OUT_CH, oh, ow)                   # NCHW, matches PyTorch


# ---------------- pure-JAX reference (for correctness check) ----------------
def involution2d_reference(x, params):
    b, cin, h, w = x.shape
    oh = (h + 2 * PAD[0] - DIL[0] * (KH - 1) - 1) // STRIDE[0] + 1
    ow = (w + 2 * PAD[1] - DIL[1] * (KW - 1) - 1) // STRIDE[1] + 1
    xi = conv1x1(x, params['w_init']) if IN_CH != OUT_CH else x
    xp = jnp.pad(xi, ((0, 0), (0, 0), (PAD[0], PAD[0]), (PAD[1], PAD[1])))
    patches = []
    for ih in range(KH):
        for iw in range(KW):
            patches.append(xp[:, :, ih * DIL[0]: ih * DIL[0] + oh,
                               iw * DIL[1]: iw * DIL[1] + ow])
    unf = jnp.stack(patches, axis=2)                      # (B, C_out, K, oh, ow)
    unf = unf.reshape(b, GROUPS, OUT_CH // GROUPS, KH * KW, oh, ow)
    ker = kernel_generation_path(x, params, oh, ow).reshape(b, GROUPS, KH * KW, oh, ow)
    out = (ker[:, :, None] * unf).sum(axis=3)             # sum over kernel positions
    return out.reshape(b, OUT_CH, oh, ow)


# ---------------- parameter init (deterministic, PyTorch shapes) ----------------
def init_params(key):
    k1, k2, k3 = jax.random.split(key, 3)
    red = OUT_CH // REDUCE_RATIO
    return {
        'w_init':   0.1 * jax.random.normal(k1, (OUT_CH, IN_CH), jnp.float32),
        'w_reduce': 0.1 * jax.random.normal(k2, (red, IN_CH), jnp.float32),
        'bn_gamma': jnp.ones((red,), jnp.float32),
        'bn_beta':  jnp.zeros((red,), jnp.float32),
        'w_span':   0.1 * jax.random.normal(k3, (KH * KW * GROUPS, red), jnp.float32),
    }


if __name__ == "__main__":
    key = jax.random.PRNGKey(0)
    kx, kp = jax.random.split(key)
    x = jax.random.normal(kx, (2, IN_CH, 16, 16), jnp.float32)   # NCHW
    params = init_params(kp)

    out = jax.jit(involution2d_forward)(x, params)
    out = jax.block_until_ready(out)

    ref = involution2d_reference(x, params)
    assert out.shape == (2, OUT_CH, 16, 16), out.shape
    assert jnp.allclose(out, ref, atol=1e-4, rtol=1e-4), float(jnp.abs(out - ref).max())

    print("KERNEL_OK")
</pallas_src>

<mosaic_0001>
module attributes {stable_mosaic.version = 11 : i64} {
  func.func @_involution_kernel(%arg0: i32, %arg1: memref<1x1x8x384xf32, #tpu.memory_space<vmem>>, %arg2: memref<1x1x49x256xf32, #tpu.memory_space<vmem>>, %arg3: memref<1x1x8x256xf32, #tpu.memory_space<vmem>>) attributes {dimension_semantics = [#tpu.dimension_semantics<parallel>], iteration_bounds = array<i64: 2>, scalar_prefetch = 0 : i64, scratch_operands = 0 : i64, tpu.core_type = #tpu.core_type<tc>, window_params = [{transform_indices = @transform_0, window_bounds = array<i64: 1, 1, 8, 384>}, {transform_indices = @transform_1, window_bounds = array<i64: 1, 1, 49, 256>}, {transform_indices = @transform_2, window_bounds = array<i64: 1, 1, 8, 256>}]} {
    %c0 = arith.constant 0 : index
    %c0_0 = arith.constant 0 : index
    %c0_1 = arith.constant 0 : index
    %c0_2 = arith.constant 0 : index
    %0 = vector.load %arg1[%c0, %c0_0, %c0_1, %c0_2] : memref<1x1x8x384xf32, #tpu.memory_space<vmem>>, vector<1x1x8x384xf32>
    %1 = vector.shape_cast %0 : vector<1x1x8x384xf32> to vector<8x384xf32>
    %cst = arith.constant 0.000000e+00 : f32
    %2 = vector.broadcast %cst : f32 to vector<8x256xf32>
    %cst_3 = arith.constant 0.000000e+00 : f32
    %3 = vector.broadcast %cst_3 : f32 to vector<8x256xf32>
    %cst_4 = arith.constant 0.000000e+00 : f32
    %4 = vector.broadcast %cst_4 : f32 to vector<8x256xf32>
    %cst_5 = arith.constant 0.000000e+00 : f32
    %5 = vector.broadcast %cst_5 : f32 to vector<8x256xf32>
    %6 = vector.extract_strided_slice %1 {offsets = [0, 0], sizes = [8, 256], strides = [1, 1]} : vector<8x384xf32> to vector<8x256xf32>
    %c0_i32 = arith.constant 0 : i32
    %c0_i32_6 = arith.constant 0 : i32
    %c0_i32_7 = arith.constant 0 : i32
    %c0_i32_8 = arith.constant 0 : i32
    %7 = tpu.memref_slice %arg2[%c0_i32, %c0_i32_6, %c0_i32_7, %c0_i32_8] : memref<1x1x49x256xf32, #tpu.memory_space<vmem>> -> memref<1x1x49x256xf32, #tpu.memory_space<vmem>>
    %8 = tpu.memref_squeeze %7 : memref<1x1x49x256xf32, #tpu.memory_space<vmem>> -> memref<49x256xf32, #tpu.memory_space<vmem>>
    %c0_9 = arith.constant 0 : index
    %c0_10 = arith.constant 0 : index
    %9 = vector.load %8[%c0_9, %c0_10] : memref<49x256xf32, #tpu.memory_space<vmem>>, vector<1x256xf32>
    %10 = vector.broadcast %9 : vector<1x256xf32> to vector<8x256xf32>
    %11 = arith.mulf %6, %10 : vector<8x256xf32>
    %12 = arith.addf %2, %11 : vector<8x256xf32>
    %13 = vector.extract_strided_slice %1 {offsets = [0, 1], sizes = [8, 256], strides = [1, 1]} : vector<8x384xf32> to vector<8x256xf32>
    %c0_i32_11 = arith.constant 0 : i32
    %c0_i32_12 = arith.constant 0 : i32
    %c0_i32_13 = arith.constant 0 : i32
    %c0_i32_14 = arith.constant 0 : i32
    %14 = tpu.memref_slice %arg2[%c0_i32_11, %c0_i32_12, %c0_i32_13, %c0_i32_14] : memref<1x1x49x256xf32, #tpu.memory_space<vmem>> -> memref<1x1x49x256xf32, #tpu.memory_space<vmem>>
    %15 = tpu.memref_squeeze %14 : memref<1x1x49x256xf32, #tpu.memory_space<vmem>> -> memref<49x256xf32, #tpu.memory_space<vmem>>
    %c1 = arith.constant 1 : index
    %c0_15 = arith.constant 0 : index
    %16 = vector.load %15[%c1, %c0_15] : memref<49x256xf32, #tpu.memory_space<vmem>>, vector<1x256xf32>
    %17 = vector.broadcast %16 : vector<1x256xf32> to vector<8x256xf32>
    %18 = arith.mulf %13, %17 : vector<8x256xf32>
    %19 = arith.addf %3, %18 : vector<8x256xf32>
    %20 = vector.extract_strided_slice %1 {offsets = [0, 2], sizes = [8, 256], strides = [1, 1]} : vector<8x384xf32> to vector<8x256xf32>
    %c0_i32_16 = arith.constant 0 : i32
    %c0_i32_17 = arith.constant 0 : i32
    %c0_i32_18 = arith.constant 0 : i32
    %c0_i32_19 = arith.constant 0 : i32
    %21 = tpu.memref_slice %arg2[%c0_i32_16, %c0_i32_17, %c0_i32_18, %c0_i32_19] : memref<1x1x49x256xf32, #tpu.memory_space<vmem>> -> memref<1x1x49x256xf32, #tpu.memory_space<vmem>>
    %22 = tpu.memref_squeeze %21 : memref<1x1x49x256xf32, #tpu.memory_space<vmem>> -> memref<49x256xf32, #tpu.memory_space<vmem>>
    %c2 = arith.constant 2 : index
    %c0_20 = arith.constant 0 : index
    %23 = vector.load %22[%c2, %c0_20] : memref<49x256xf32, #tpu.memory_space<vmem>>, vector<1x256xf32>
    %24 = vector.broadcast %23 : vector<1x256xf32> to vector<8x256xf32>
    %25 = arith.mulf %20, %24 : vector<8x256xf32>
    %26 = arith.addf %4, %25 : vector<8x256xf32>
    %27 = vector.extract_strided_slice %1 {offsets = [0, 3], sizes = [8, 256], strides = [1, 1]} : vector<8x384xf32> to vector<8x256xf32>
    %c0_i32_21 = arith.constant 0 : i32
    %c0_i32_22 = arith.constant 0 : i32
    %c0_i32_23 = arith.constant 0 : i32
    %c0_i32_24 = arith.constant 0 : i32
    %28 = tpu.memref_slice %arg2[%c0_i32_21, %c0_i32_22, %c0_i32_23, %c0_i32_24] : memref<1x1x49x256xf32, #tpu.memory_space<vmem>> -> memref<1x1x49x256xf32, #tpu.memory_space<vmem>>
    %29 = tpu.memref_squeeze %28 : memref<1x1x49x256xf32, #tpu.memory_space<vmem>> -> memref<49x256xf32, #tpu.memory_space<vmem>>
    %c3 = arith.constant 3 : index
    %c0_25 = arith.constant 0 : index
    %30 = vector.load %29[%c3, %c0_25] : memref<49x256xf32, #tpu.memory_space<vmem>>, vector<1x256xf32>
    %31 = vector.broadcast %30 : vector<1x256xf32> to vector<8x256xf32>
    %32 = arith.mulf %27, %31 : vector<8x256xf32>
    %33 = arith.addf %5, %32 : vector<8x256xf32>
    %34 = vector.extract_strided_slice %1 {offsets = [0, 4], sizes = [8, 256], strides = [1, 1]} : vector<8x384xf32> to vector<8x256xf32>
    %c0_i32_26 = arith.constant 0 : i32
    %c0_i32_27 = arith.constant 0 : i32
    %c0_i32_28 = arith.constant 0 : i32
    %c0_i32_29 = arith.constant 0 : i32
    %35 = tpu.memref_slice %arg2[%c0_i32_26, %c0_i32_27, %c0_i32_28, %c0_i32_29] : memref<1x1x49x256xf32, #tpu.memory_space<vmem>> -> memref<1x1x49x256xf32, #tpu.memory_space<vmem>>
    %36 = tpu.memref_squeeze %35 : memref<1x1x49x256xf32, #tpu.memory_space<vmem>> -> memref<49x256xf32, #tpu.memory_space<vmem>>
    %c4 = arith.constant 4 : index
    %c0_30 = arith.constant 0 : index
    %37 = vector.load %36[%c4, %c0_30] : memref<49x256xf32, #tpu.memory_space<vmem>>, vector<1x256xf32>
    %38 = vector.broadcast %37 : vector<1x256xf32> to vector<8x256xf32>
    %39 = arith.mulf %34, %38 : vector<8x256xf32>
    %40 = arith.addf %12, %39 : vector<8x256xf32>
    %41 = vector.extract_strided_slice %1 {offsets = [0, 5], sizes = [8, 256], strides = [1, 1]} : vector<8x384xf32> to vector<8x256xf32>
    %c0_i32_31 = arith.constant 0 : i32
    %c0_i32_32 = arith.constant 0 : i32
    %c0_i32_33 = arith.constant 0 : i32
    %c0_i32_34 = arith.constant 0 : i32
    %42 = tpu.memref_slice %arg2[%c0_i32_31, %c0_i32_32, %c0_i32_33, %c0_i32_34] : memref<1x1x49x256xf32, #tpu.memory_space<vmem>> -> memref<1x1x49x256xf32, #tpu.memory_space<vmem>>
    %43 = tpu.memref_squeeze %42 : memref<1x1x49x256xf32, #tpu.memory_space<vmem>> -> memref<49x256xf32, #tpu.memory_space<vmem>>
    %c5 = arith.constant 5 : index
    %c0_35 = arith.constant 0 : index
    %44 = vector.load %43[%c5, %c0_35] : memref<49x256xf32, #tpu.memory_space<vmem>>, vector<1x256xf32>
    %45 = vector.broadcast %44 : vector<1x256xf32> to vector<8x256xf32>
    %46 = arith.mulf %41, %45 : vector<8x256xf32>
    %47 = arith.addf %19, %46 : vector<8x256xf32>
    %48 = vector.extract_strided_slice %1 {offsets = [0, 6], sizes = [8, 256], strides = [1, 1]} : vector<8x384xf32> to vector<8x256xf32>
    %c0_i32_36 = arith.constant 0 : i32
    %c0_i32_37 = arith.constant 0 : i32
    %c0_i32_38 = arith.constant 0 : i32
    %c0_i32_39 = arith.constant 0 : i32
    %49 = tpu.memref_slice %arg2[%c0_i32_36, %c0_i32_37, %c0_i32_38, %c0_i32_39] : memref<1x1x49x256xf32, #tpu.memory_space<vmem>> -> memref<1x1x49x256xf32, #tpu.memory_space<vmem>>
    %50 = tpu.memref_squeeze %49 : memref<1x1x49x256xf32, #tpu.memory_space<vmem>> -> memref<49x256xf32, #tpu.memory_space<vmem>>
    %c6 = arith.constant 6 : index
    %c0_40 = arith.constant 0 : index
    %51 = vector.load %50[%c6, %c0_40] : memref<49x256xf32, #tpu.memory_space<vmem>>, vector<1x256xf32>
    %52 = vector.broadcast %51 : vector<1x256xf32> to vector<8x256xf32>
    %53 = arith.mulf %48, %52 : vector<8x256xf32>
    %54 = arith.addf %26, %53 : vector<8x256xf32>
    %55 = vector.extract_strided_slice %1 {offsets = [0, 16], sizes = [8, 256], strides = [1, 1]} : vector<8x384xf32> to vector<8x256xf32>
    %c0_i32_41 = arith.constant 0 : i32
    %c0_i32_42 = arith.constant 0 : i32
    %c0_i32_43 = arith.constant 0 : i32
    %c0_i32_44 = arith.constant 0 : i32
    %56 = tpu.memref_slice %arg2[%c0_i32_41, %c0_i32_42, %c0_i32_43, %c0_i32_44] : memref<1x1x49x256xf32, #tpu.memory_space<vmem>> -> memref<1x1x49x256xf32, #tpu.memory_space<vmem>>
    %57 = tpu.memref_squeeze %56 : memref<1x1x49x256xf32, #tpu.memory_space<vmem>> -> memref<49x256xf32, #tpu.memory_space<vmem>>
    %c7 = arith.constant 7 : index
    %c0_45 = arith.constant 0 : index
    %58 = vector.load %57[%c7, %c0_45] : memref<49x256xf32, #tpu.memory_space<vmem>>, vector<1x256xf32>
    %59 = vector.broadcast %58 : vector<1x256xf32> to vector<8x256xf32>
    %60 = arith.mulf %55, %59 : vector<8x256xf32>
    %61 = arith.addf %33, %60 : vector<8x256xf32>
    %62 = vector.extract_strided_slice %1 {offsets = [0, 17], sizes = [8, 256], strides = [1, 1]} : vector<8x384xf32> to vector<8x256xf32>
    %c0_i32_46 = arith.constant 0 : i32
    %c0_i32_47 = arith.constant 0 : i32
    %c0_i32_48 = arith.constant 0 : i32
    %c0_i32_49 = arith.constant 0 : i32
    %63 = tpu.memref_slice %arg2[%c0_i32_46, %c0_i32_47, %c0_i32_48, %c0_i32_49] : memref<1x1x49x256xf32, #tpu.memory_space<vmem>> -> memref<1x1x49x256xf32, #tpu.memory_space<vmem>>
    %64 = tpu.memref_squeeze %63 : memref<1x1x49x256xf32, #tpu.memory_space<vmem>> -> memref<49x256xf32, #tpu.memory_space<vmem>>
    %c8 = arith.constant 8 : index
    %c0_50 = arith.constant 0 : index
    %65 = vector.load %64[%c8, %c0_50] : memref<49x256xf32, #tpu.memory_space<vmem>>, vector<1x256xf32>
    %66 = vector.broadcast %65 : vector<1x256xf32> to vector<8x256xf32>
    %67 = arith.mulf %62, %66 : vector<8x256xf32>
    %68 = arith.addf %40, %67 : vector<8x256xf32>
    %69 = vector.extract_strided_slice %1 {offsets = [0, 18], sizes = [8, 256], strides = [1, 1]} : vector<8x384xf32> to vector<8x256xf32>
    %c0_i32_51 = arith.constant 0 : i32
    %c0_i32_52 = arith.constant 0 : i32
    %c0_i32_53 = arith.constant 0 : i32
    %c0_i32_54 = arith.constant 0 : i32
    %70 = tpu.memref_slice %arg2[%c0_i32_51, %c0_i32_52, %c0_i32_53, %c0_i32_54] : memref<1x1x49x256xf32, #tpu.memory_space<vmem>> -> memref<1x1x49x256xf32, #tpu.memory_space<vmem>>
    %71 = tpu.memref_squeeze %70 : memref<1x1x49x256xf32, #tpu.memory_space<vmem>> -> memref<49x256xf32, #tpu.memory_space<vmem>>
    %c9 = arith.constant 9 : index
    %c0_55 = arith.constant 0 : index
    %72 = vector.load %71[%c9, %c0_55] : memref<49x256xf32, #tpu.memory_space<vmem>>, vector<1x256xf32>
    %73 = vector.broadcast %72 : vector<1x256xf32> to vector<8x256xf32>
    %74 = arith.mulf %69, %73 : vector<8x256xf32>
    %75 = arith.addf %47, %74 : vector<8x256xf32>
    %76 = vector.extract_strided_slice %1 {offsets = [0, 19], sizes = [8, 256], strides = [1, 1]} : vector<8x384xf32> to vector<8x256xf32>
    %c0_i32_56 = arith.constant 0 : i32
    %c0_i32_57 = arith.constant 0 : i32
    %c0_i32_58 = arith.constant 0 : i32
    %c0_i32_59 = arith.constant 0 : i32
    %77 = tpu.memref_slice %arg2[%c0_i32_56, %c0_i32_57, %c0_i32_58, %c0_i32_59] : memref<1x1x49x256xf32, #tpu.memory_space<vmem>> -> memref<1x1x49x256xf32, #tpu.memory_space<vmem>>
    %78 = tpu.memref_squeeze %77 : memref<1x1x49x256xf32, #tpu.memory_space<vmem>> -> memref<49x256xf32, #tpu.memory_space<vmem>>
    %c10 = arith.constant 10 : index
    %c0_60 = arith.constant 0 : index
    %79 = vector.load %78[%c10, %c0_60] : memref<49x256xf32, #tpu.memory_space<vmem>>, vector<1x256xf32>
    %80 = vector.broadcast %79 : vector<1x256xf32> to vector<8x256xf32>
    %81 = arith.mulf %76, %80 : vector<8x256xf32>
    %82 = arith.addf %54, %81 : vector<8x256xf32>
    %83 = vector.extract_strided_slice %1 {offsets = [0, 20], sizes = [8, 256], strides = [1, 1]} : vector<8x384xf32> to vector<8x256xf32>
    %c0_i32_61 = arith.constant 0 : i32
    %c0_i32_62 = arith.constant 0 : i32
    %c0_i32_63 = arith.constant 0 : i32
    %c0_i32_64 = arith.constant 0 : i32
    %84 = tpu.memref_slice %arg2[%c0_i32_61, %c0_i32_62, %c0_i32_63, %c0_i32_64] : memref<1x1x49x256xf32, #tpu.memory_space<vmem>> -> memref<1x1x49x256xf32, #tpu.memory_space<vmem>>
    %85 = tpu.memref_squeeze %84 : memref<1x1x49x256xf32, #tpu.memory_space<vmem>> -> memref<49x256xf32, #tpu.memory_space<vmem>>
    %c11 = arith.constant 11 : index
    %c0_65 = arith.constant 0 : index
    %86 = vector.load %85[%c11, %c0_65] : memref<49x256xf32, #tpu.memory_space<vmem>>, vector<1x256xf32>
    %87 = vector.broadcast %86 : vector<1x256xf32> to vector<8x256xf32>
    %88 = arith.mulf %83, %87 : vector<8x256xf32>
    %89 = arith.addf %61, %88 : vector<8x256xf32>
    %90 = vector.extract_strided_slice %1 {offsets = [0, 21], sizes = [8, 256], strides = [1, 1]} : vector<8x384xf32> to vector<8x256xf32>
    %c0_i32_66 = arith.constant 0 : i32
    %c0_i32_67 = arith.constant 0 : i32
    %c0_i32_68 = arith.constant 0 : i32
    %c0_i32_69 = arith.constant 0 : i32
    %91 = tpu.memref_slice %arg2[%c0_i32_66, %c0_i32_67, %c0_i32_68, %c0_i32_69] : memref<1x1x49x256xf32, #tpu.memory_space<vmem>> -> memref<1x1x49x256xf32, #tpu.memory_space<vmem>>
    %92 = tpu.memref_squeeze %91 : memref<1x1x49x256xf32, #tpu.memory_space<vmem>> -> memref<49x256xf32, #tpu.memory_space<vmem>>
    %c12 = arith.constant 12 : index
    %c0_70 = arith.constant 0 : index
    %93 = vector.load %92[%c12, %c0_70] : memref<49x256xf32, #tpu.memory_space<vmem>>, vector<1x256xf32>
    %94 = vector.broadcast %93 : vector<1x256xf32> to vector<8x256xf32>
    %95 = arith.mulf %90, %94 : vector<8x256xf32>
    %96 = arith.addf %68, %95 : vector<8x256xf32>
    %97 = vector.extract_strided_slice %1 {offsets = [0, 22], sizes = [8, 256], strides = [1, 1]} : vector<8x384xf32> to vector<8x256xf32>
    %c0_i32_71 = arith.constant 0 : i32
    %c0_i32_72 = arith.constant 0 : i32
    %c0_i32_73 = arith.constant 0 : i32
    %c0_i32_74 = arith.constant 0 : i32
    %98 = tpu.memref_slice %arg2[%c0_i32_71, %c0_i32_72, %c0_i32_73, %c0_i32_74] : memref<1x1x49x256xf32, #tpu.memory_space<vmem>> -> memref<1x1x49x256xf32, #tpu.memory_space<vmem>>
    %99 = tpu.memref_squeeze %98 : memref<1x1x49x256xf32, #tpu.memory_space<vmem>> -> memref<49x256xf32, #tpu.memory_space<vmem>>
    %c13 = arith.constant 13 : index
    %c0_75 = arith.constant 0 : index
    %100 = vector.load %99[%c13, %c0_75] : memref<49x256xf32, #tpu.memory_space<vmem>>, vector<1x256xf32>
    %101 = vector.broadcast %100 : vector<1x256xf32> to vector<8x256xf32>
    %102 = arith.mulf %97, %101 : vector<8x256xf32>
    %103 = arith.addf %75, %102 : vector<8x256xf32>
    %104 = vector.extract_strided_slice %1 {offsets = [0, 32], sizes = [8, 256], strides = [1, 1]} : vector<8x384xf32> to vector<8x256xf32>
    %c0_i32_76 = arith.constant 0 : i32
    %c0_i32_77 = arith.constant 0 : i32
    %c0_i32_78 = arith.constant 0 : i32
    %c0_i32_79 = arith.constant 0 : i32
    %105 = tpu.memref_slice %arg2[%c0_i32_76, %c0_i32_77, %c0_i32_78, %c0_i32_79] : memref<1x1x49x256xf32, #tpu.memory_space<vmem>> -> memref<1x1x49x256xf32, #tpu.memory_space<vmem>>
    %106 = tpu.memref_squeeze %105 : memref<1x1x49x256xf32, #tpu.memory_space<vmem>> -> memref<49x256xf32, #tpu.memory_space<vmem>>
    %c14 = arith.constant 14 : index
    %c0_80 = arith.constant 0 : index
    %107 = vector.load %106[%c14, %c0_80] : memref<49x256xf32, #tpu.memory_space<vmem>>, vector<1x256xf32>
    %108 = vector.broadcast %107 : vector<1x256xf32> to vector<8x256xf32>
    %109 = arith.mulf %104, %108 : vector<8x256xf32>
    %110 = arith.addf %82, %109 : vector<8x256xf32>
    %111 = vector.extract_strided_slice %1 {offsets = [0, 33], sizes = [8, 256], strides = [1, 1]} : vector<8x384xf32> to vector<8x256xf32>
    %c0_i32_81 = arith.constant 0 : i32
    %c0_i32_82 = arith.constant 0 : i32
    %c0_i32_83 = arith.constant 0 : i32
    %c0_i32_84 = arith.constant 0 : i32
    %112 = tpu.memref_slice %arg2[%c0_i32_81, %c0_i32_82, %c0_i32_83, %c0_i32_84] : memref<1x1x49x256xf32, #tpu.memory_space<vmem>> -> memref<1x1x49x256xf32, #tpu.memory_space<vmem>>
    %113 = tpu.memref_squeeze %112 : memref<1x1x49x256xf32, #tpu.memory_space<vmem>> -> memref<49x256xf32, #tpu.memory_space<vmem>>
    %c15 = arith.constant 15 : index
    %c0_85 = arith.constant 0 : index
    %114 = vector.load %113[%c15, %c0_85] : memref<49x256xf32, #tpu.memory_space<vmem>>, vector<1x256xf32>
    %115 = vector.broadcast %114 : vector<1x256xf32> to vector<8x256xf32>
    %116 = arith.mulf %111, %115 : vector<8x256xf32>
    %117 = arith.addf %89, %116 : vector<8x256xf32>
    %118 = vector.extract_strided_slice %1 {offsets = [0, 34], sizes = [8, 256], strides = [1, 1]} : vector<8x384xf32> to vector<8x256xf32>
    %c0_i32_86 = arith.constant 0 : i32
    %c0_i32_87 = arith.constant 0 : i32
    %c0_i32_88 = arith.constant 0 : i32
    %c0_i32_89 = arith.constant 0 : i32
    %119 = tpu.memref_slice %arg2[%c0_i32_86, %c0_i32_87, %c0_i32_88, %c0_i32_89] : memref<1x1x49x256xf32, #tpu.memory_space<vmem>> -> memref<1x1x49x256xf32, #tpu.memory_space<vmem>>
    %120 = tpu.memref_squeeze %119 : memref<1x1x49x256xf32, #tpu.memory_space<vmem>> -> memref<49x256xf32, #tpu.memory_space<vmem>>
    %c16 = arith.constant 16 : index
    %c0_90 = arith.constant 0 : index
    %121 = vector.load %120[%c16, %c0_90] : memref<49x256xf32, #tpu.memory_space<vmem>>, vector<1x256xf32>
    %122 = vector.broadcast %121 : vector<1x256xf32> to vector<8x256xf32>
    %123 = arith.mulf %118, %122 : vector<8x256xf32>
    %124 = arith.addf %96, %123 : vector<8x256xf32>
    %125 = vector.extract_strided_slice %1 {offsets = [0, 35], sizes = [8, 256], strides = [1, 1]} : vector<8x384xf32> to vector<8x256xf32>
    %c0_i32_91 = arith.constant 0 : i32
    %c0_i32_92 = arith.constant 0 : i32
    %c0_i32_93 = arith.constant 0 : i32
    %c0_i32_94 = arith.constant 0 : i32
    %126 = tpu.memref_slice %arg2[%c0_i32_91, %c0_i32_92, %c0_i32_93, %c0_i32_94] : memref<1x1x49x256xf32, #tpu.memory_space<vmem>> -> memref<1x1x49x256xf32, #tpu.memory_space<vmem>>
    %127 = tpu.memref_squeeze %126 : memref<1x1x49x256xf32, #tpu.memory_space<vmem>> -> memref<49x256xf32, #tpu.memory_space<vmem>>
    %c17 = arith.constant 17 : index
    %c0_95 = arith.constant 0 : index
    %128 = vector.load %127[%c17, %c0_95] : memref<49x256xf32, #tpu.memory_space<vmem>>, vector<1x256xf32>
    %129 = vector.broadcast %128 : vector<1x256xf32> to vector<8x256xf32>
    %130 = arith.mulf %125, %129 : vector<8x256xf32>
    %131 = arith.addf %103, %130 : vector<8x256xf32>
    %132 = vector.extract_strided_slice %1 {offsets = [0, 36], sizes = [8, 256], strides = [1, 1]} : vector<8x384xf32> to vector<8x256xf32>
    %c0_i32_96 = arith.constant 0 : i32
    %c0_i32_97 = arith.constant 0 : i32
    %c0_i32_98 = arith.constant 0 : i32
    %c0_i32_99 = arith.constant 0 : i32
    %133 = tpu.memref_slice %arg2[%c0_i32_96, %c0_i32_97, %c0_i32_98, %c0_i32_99] : memref<1x1x49x256xf32, #tpu.memory_space<vmem>> -> memref<1x1x49x256xf32, #tpu.memory_space<vmem>>
    %134 = tpu.memref_squeeze %133 : memref<1x1x49x256xf32, #tpu.memory_space<vmem>> -> memref<49x256xf32, #tpu.memory_space<vmem>>
    %c18 = arith.constant 18 : index
    %c0_100 = arith.constant 0 : index
    %135 = vector.load %134[%c18, %c0_100] : memref<49x256xf32, #tpu.memory_space<vmem>>, vector<1x256xf32>
    %136 = vector.broadcast %135 : vector<1x256xf32> to vector<8x256xf32>
    %137 = arith.mulf %132, %136 : vector<8x256xf32>
    %138 = arith.addf %110, %137 : vector<8x256xf32>
    %139 = vector.extract_strided_slice %1 {offsets = [0, 37], sizes = [8, 256], strides = [1, 1]} : vector<8x384xf32> to vector<8x256xf32>
    %c0_i32_101 = arith.constant 0 : i32
    %c0_i32_102 = arith.constant 0 : i32
    %c0_i32_103 = arith.constant 0 : i32
    %c0_i32_104 = arith.constant 0 : i32
    %140 = tpu.memref_slice %arg2[%c0_i32_101, %c0_i32_102, %c0_i32_103, %c0_i32_104] : memref<1x1x49x256xf32, #tpu.memory_space<vmem>> -> memref<1x1x49x256xf32, #tpu.memory_space<vmem>>
    %141 = tpu.memref_squeeze %140 : memref<1x1x49x256xf32, #tpu.memory_space<vmem>> -> memref<49x256xf32, #tpu.memory_space<vmem>>
    %c19 = arith.constant 19 : index
    %c0_105 = arith.constant 0 : index
    %142 = vector.load %141[%c19, %c0_105] : memref<49x256xf32, #tpu.memory_space<vmem>>, vector<1x256xf32>
    %143 = vector.broadcast %142 : vector<1x256xf32> to vector<8x256xf32>
    %144 = arith.mulf %139, %143 : vector<8x256xf32>
    %145 = arith.addf %117, %144 : vector<8x256xf32>
    %146 = vector.extract_strided_slice %1 {offsets = [0, 38], sizes = [8, 256], strides = [1, 1]} : vector<8x384xf32> to vector<8x256xf32>
    %c0_i32_106 = arith.constant 0 : i32
    %c0_i32_107 = arith.constant 0 : i32
    %c0_i32_108 = arith.constant 0 : i32
    %c0_i32_109 = arith.constant 0 : i32
    %147 = tpu.memref_slice %arg2[%c0_i32_106, %c0_i32_107, %c0_i32_108, %c0_i32_109] : memref<1x1x49x256xf32, #tpu.memory_space<vmem>> -> memref<1x1x49x256xf32, #tpu.memory_space<vmem>>
    %148 = tpu.memref_squeeze %147 : memref<1x1x49x256xf32, #tpu.memory_space<vmem>> -> memref<49x256xf32, #tpu.memory_space<vmem>>
    %c20 = arith.constant 20 : index
    %c0_110 = arith.constant 0 : index
    %149 = vector.load %148[%c20, %c0_110] : memref<49x256xf32, #tpu.memory_space<vmem>>, vector<1x256xf32>
    %150 = vector.broadcast %149 : vector<1x256xf32> to vector<8x256xf32>
    %151 = arith.mulf %146, %150 : vector<8x256xf32>
    %152 = arith.addf %124, %151 : vector<8x256xf32>
    %153 = vector.extract_strided_slice %1 {offsets = [0, 48], sizes = [8, 256], strides = [1, 1]} : vector<8x384xf32> to vector<8x256xf32>
    %c0_i32_111 = arith.constant 0 : i32
    %c0_i32_112 = arith.constant 0 : i32
    %c0_i32_113 = arith.constant 0 : i32
    %c0_i32_114 = arith.constant 0 : i32
    %154 = tpu.memref_slice %arg2[%c0_i32_111, %c0_i32_112, %c0_i32_113, %c0_i32_114] : memref<1x1x49x256xf32, #tpu.memory_space<vmem>> -> memref<1x1x49x256xf32, #tpu.memory_space<vmem>>
    %155 = tpu.memref_squeeze %154 : memref<1x1x49x256xf32, #tpu.memory_space<vmem>> -> memref<49x256xf32, #tpu.memory_space<vmem>>
    %c21 = arith.constant 21 : index
    %c0_115 = arith.constant 0 : index
    %156 = vector.load %155[%c21, %c0_115] : memref<49x256xf32, #tpu.memory_space<vmem>>, vector<1x256xf32>
    %157 = vector.broadcast %156 : vector<1x256xf32> to vector<8x256xf32>
    %158 = arith.mulf %153, %157 : vector<8x256xf32>
    %159 = arith.addf %131, %158 : vector<8x256xf32>
    %160 = vector.extract_strided_slice %1 {offsets = [0, 49], sizes = [8, 256], strides = [1, 1]} : vector<8x384xf32> to vector<8x256xf32>
    %c0_i32_116 = arith.constant 0 : i32
    %c0_i32_117 = arith.constant 0 : i32
    %c0_i32_118 = arith.constant 0 : i32
    %c0_i32_119 = arith.constant 0 : i32
    %161 = tpu.memref_slice %arg2[%c0_i32_116, %c0_i32_117, %c0_i32_118, %c0_i32_119] : memref<1x1x49x256xf32, #tpu.memory_space<vmem>> -> memref<1x1x49x256xf32, #tpu.memory_space<vmem>>
    %162 = tpu.memref_squeeze %161 : memref<1x1x49x256xf32, #tpu.memory_space<vmem>> -> memref<49x256xf32, #tpu.memory_space<vmem>>
    %c22 = arith.constant 22 : index
    %c0_120 = arith.constant 0 : index
    %163 = vector.load %162[%c22, %c0_120] : memref<49x256xf32, #tpu.memory_space<vmem>>, vector<1x256xf32>
    %164 = vector.broadcast %163 : vector<1x256xf32> to vector<8x256xf32>
    %165 = arith.mulf %160, %164 : vector<8x256xf32>
    %166 = arith.addf %138, %165 : vector<8x256xf32>
    %167 = vector.extract_strided_slice %1 {offsets = [0, 50], sizes = [8, 256], strides = [1, 1]} : vector<8x384xf32> to vector<8x256xf32>
    %c0_i32_121 = arith.constant 0 : i32
    %c0_i32_122 = arith.constant 0 : i32
    %c0_i32_123 = arith.constant 0 : i32
    %c0_i32_124 = arith.constant 0 : i32
    %168 = tpu.memref_slice %arg2[%c0_i32_121, %c0_i32_122, %c0_i32_123, %c0_i32_124] : memref<1x1x49x256xf32, #tpu.memory_space<vmem>> -> memref<1x1x49x256xf32, #tpu.memory_space<vmem>>
    %169 = tpu.memref_squeeze %168 : memref<1x1x49x256xf32, #tpu.memory_space<vmem>> -> memref<49x256xf32, #tpu.memory_space<vmem>>
    %c23 = arith.constant 23 : index
    %c0_125 = arith.constant 0 : index
    %170 = vector.load %169[%c23, %c0_125] : memref<49x256xf32, #tpu.memory_space<vmem>>, vector<1x256xf32>
    %171 = vector.broadcast %170 : vector<1x256xf32> to vector<8x256xf32>
    %172 = arith.mulf %167, %171 : vector<8x256xf32>
    %173 = arith.addf %145, %172 : vector<8x256xf32>
    %174 = vector.extract_strided_slice %1 {offsets = [0, 51], sizes = [8, 256], strides = [1, 1]} : vector<8x384xf32> to vector<8x256xf32>
    %c0_i32_126 = arith.constant 0 : i32
    %c0_i32_127 = arith.constant 0 : i32
    %c0_i32_128 = arith.constant 0 : i32
    %c0_i32_129 = arith.constant 0 : i32
    %175 = tpu.memref_slice %arg2[%c0_i32_126, %c0_i32_127, %c0_i32_128, %c0_i32_129] : memref<1x1x49x256xf32, #tpu.memory_space<vmem>> -> memref<1x1x49x256xf32, #tpu.memory_space<vmem>>
    %176 = tpu.memref_squeeze %175 : memref<1x1x49x256xf32, #tpu.memory_space<vmem>> -> memref<49x256xf32, #tpu.memory_space<vmem>>
    %c24 = arith.constant 24 : index
    %c0_130 = arith.constant 0 : index
    %177 = vector.load %176[%c24, %c0_130] : memref<49x256xf32, #tpu.memory_space<vmem>>, vector<1x256xf32>
    %178 = vector.broadcast %177 : vector<1x256xf32> to vector<8x256xf32>
    %179 = arith.mulf %174, %178 : vector<8x256xf32>
    %180 = arith.addf %152, %179 : vector<8x256xf32>
    %181 = vector.extract_strided_slice %1 {offsets = [0, 52], sizes = [8, 256], strides = [1, 1]} : vector<8x384xf32> to vector<8x256xf32>
    %c0_i32_131 = arith.constant 0 : i32
    %c0_i32_132 = arith.constant 0 : i32
    %c0_i32_133 = arith.constant 0 : i32
    %c0_i32_134 = arith.constant 0 : i32
    %182 = tpu.memref_slice %arg2[%c0_i32_131, %c0_i32_132, %c0_i32_133, %c0_i32_134] : memref<1x1x49x256xf32, #tpu.memory_space<vmem>> -> memref<1x1x49x256xf32, #tpu.memory_space<vmem>>
    %183 = tpu.memref_squeeze %182 : memref<1x1x49x256xf32, #tpu.memory_space<vmem>> -> memref<49x256xf32, #tpu.memory_space<vmem>>
    %c25 = arith.constant 25 : index
    %c0_135 = arith.constant 0 : index
    %184 = vector.load %183[%c25, %c0_135] : memref<49x256xf32, #tpu.memory_space<vmem>>, vector<1x256xf32>
    %185 = vector.broadcast %184 : vector<1x256xf32> to vector<8x256xf32>
    %186 = arith.mulf %181, %185 : vector<8x256xf32>
    %187 = arith.addf %159, %186 : vector<8x256xf32>
    %188 = vector.extract_strided_slice %1 {offsets = [0, 53], sizes = [8, 256], strides = [1, 1]} : vector<8x384xf32> to vector<8x256xf32>
    %c0_i32_136 = arith.constant 0 : i32
    %c0_i32_137 = arith.constant 0 : i32
    %c0_i32_138 = arith.constant 0 : i32
    %c0_i32_139 = arith.constant 0 : i32
    %189 = tpu.memref_slice %arg2[%c0_i32_136, %c0_i32_137, %c0_i32_138, %c0_i32_139] : memref<1x1x49x256xf32, #tpu.memory_space<vmem>> -> memref<1x1x49x256xf32, #tpu.memory_space<vmem>>
    %190 = tpu.memref_squeeze %189 : memref<1x1x49x256xf32, #tpu.memory_space<vmem>> -> memref<49x256xf32, #tpu.memory_space<vmem>>
    %c26 = arith.constant 26 : index
    %c0_140 = arith.constant 0 : index
    %191 = vector.load %190[%c26, %c0_140] : memref<49x256xf32, #tpu.memory_space<vmem>>, vector<1x256xf32>
    %192 = vector.broadcast %191 : vector<1x256xf32> to vector<8x256xf32>
    %193 = arith.mulf %188, %192 : vector<8x256xf32>
    %194 = arith.addf %166, %193 : vector<8x256xf32>
    %195 = vector.extract_strided_slice %1 {offsets = [0, 54], sizes = [8, 256], strides = [1, 1]} : vector<8x384xf32> to vector<8x256xf32>
    %c0_i32_141 = arith.constant 0 : i32
    %c0_i32_142 = arith.constant 0 : i32
    %c0_i32_143 = arith.constant 0 : i32
    %c0_i32_144 = arith.constant 0 : i32
    %196 = tpu.memref_slice %arg2[%c0_i32_141, %c0_i32_142, %c0_i32_143, %c0_i32_144] : memref<1x1x49x256xf32, #tpu.memory_space<vmem>> -> memref<1x1x49x256xf32, #tpu.memory_space<vmem>>
    %197 = tpu.memref_squeeze %196 : memref<1x1x49x256xf32, #tpu.memory_space<vmem>> -> memref<49x256xf32, #tpu.memory_space<vmem>>
    %c27 = arith.constant 27 : index
    %c0_145 = arith.constant 0 : index
    %198 = vector.load %197[%c27, %c0_145] : memref<49x256xf32, #tpu.memory_space<vmem>>, vector<1x256xf32>
    %199 = vector.broadcast %198 : vector<1x256xf32> to vector<8x256xf32>
    %200 = arith.mulf %195, %199 : vector<8x256xf32>
    %201 = arith.addf %173, %200 : vector<8x256xf32>
    %202 = vector.extract_strided_slice %1 {offsets = [0, 64], sizes = [8, 256], strides = [1, 1]} : vector<8x384xf32> to vector<8x256xf32>
    %c0_i32_146 = arith.constant 0 : i32
    %c0_i32_147 = arith.constant 0 : i32
    %c0_i32_148 = arith.constant 0 : i32
    %c0_i32_149 = arith.constant 0 : i32
    %203 = tpu.memref_slice %arg2[%c0_i32_146, %c0_i32_147, %c0_i32_148, %c0_i32_149] : memref<1x1x49x256xf32, #tpu.memory_space<vmem>> -> memref<1x1x49x256xf32, #tpu.memory_space<vmem>>
    %204 = tpu.memref_squeeze %203 : memref<1x1x49x256xf32, #tpu.memory_space<vmem>> -> memref<49x256xf32, #tpu.memory_space<vmem>>
    %c28 = arith.constant 28 : index
    %c0_150 = arith.constant 0 : index
    %205 = vector.load %204[%c28, %c0_150] : memref<49x256xf32, #tpu.memory_space<vmem>>, vector<1x256xf32>
    %206 = vector.broadcast %205 : vector<1x256xf32> to vector<8x256xf32>
    %207 = arith.mulf %202, %206 : vector<8x256xf32>
    %208 = arith.addf %180, %207 : vector<8x256xf32>
    %209 = vector.extract_strided_slice %1 {offsets = [0, 65], sizes = [8, 256], strides = [1, 1]} : vector<8x384xf32> to vector<8x256xf32>
    %c0_i32_151 = arith.constant 0 : i32
    %c0_i32_152 = arith.constant 0 : i32
    %c0_i32_153 = arith.constant 0 : i32
    %c0_i32_154 = arith.constant 0 : i32
    %210 = tpu.memref_slice %arg2[%c0_i32_151, %c0_i32_152, %c0_i32_153, %c0_i32_154] : memref<1x1x49x256xf32, #tpu.memory_space<vmem>> -> memref<1x1x49x256xf32, #tpu.memory_space<vmem>>
    %211 = tpu.memref_squeeze %210 : memref<1x1x49x256xf32, #tpu.memory_space<vmem>> -> memref<49x256xf32, #tpu.memory_space<vmem>>
    %c29 = arith.constant 29 : index
    %c0_155 = arith.constant 0 : index
    %212 = vector.load %211[%c29, %c0_155] : memref<49x256xf32, #tpu.memory_space<vmem>>, vector<1x256xf32>
    %213 = vector.broadcast %212 : vector<1x256xf32> to vector<8x256xf32>
    %214 = arith.mulf %209, %213 : vector<8x256xf32>
    %215 = arith.addf %187, %214 : vector<8x256xf32>
    %216 = vector.extract_strided_slice %1 {offsets = [0, 66], sizes = [8, 256], strides = [1, 1]} : vector<8x384xf32> to vector<8x256xf32>
    %c0_i32_156 = arith.constant 0 : i32
    %c0_i32_157 = arith.constant 0 : i32
    %c0_i32_158 = arith.constant 0 : i32
    %c0_i32_159 = arith.constant 0 : i32
    %217 = tpu.memref_slice %arg2[%c0_i32_156, %c0_i32_157, %c0_i32_158, %c0_i32_159] : memref<1x1x49x256xf32, #tpu.memory_space<vmem>> -> memref<1x1x49x256xf32, #tpu.memory_space<vmem>>
    %218 = tpu.memref_squeeze %217 : memref<1x1x49x256xf32, #tpu.memory_space<vmem>> -> memref<49x256xf32, #tpu.memory_space<vmem>>
    %c30 = arith.constant 30 : index
    %c0_160 = arith.constant 0 : index
    %219 = vector.load %218[%c30, %c0_160] : memref<49x256xf32, #tpu.memory_space<vmem>>, vector<1x256xf32>
    %220 = vector.broadcast %219 : vector<1x256xf32> to vector<8x256xf32>
    %221 = arith.mulf %216, %220 : vector<8x256xf32>
    %222 = arith.addf %194, %221 : vector<8x256xf32>
    %223 = vector.extract_strided_slice %1 {offsets = [0, 67], sizes = [8, 256], strides = [1, 1]} : vector<8x384xf32> to vector<8x256xf32>
    %c0_i32_161 = arith.constant 0 : i32
    %c0_i32_162 = arith.constant 0 : i32
    %c0_i32_163 = arith.constant 0 : i32
    %c0_i32_164 = arith.constant 0 : i32
    %224 = tpu.memref_slice %arg2[%c0_i32_161, %c0_i32_162, %c0_i32_163, %c0_i32_164] : memref<1x1x49x256xf32, #tpu.memory_space<vmem>> -> memref<1x1x49x256xf32, #tpu.memory_space<vmem>>
    %225 = tpu.memref_squeeze %224 : memref<1x1x49x256xf32, #tpu.memory_space<vmem>> -> memref<49x256xf32, #tpu.memory_space<vmem>>
    %c31 = arith.constant 31 : index
    %c0_165 = arith.constant 0 : index
    %226 = vector.load %225[%c31, %c0_165] : memref<49x256xf32, #tpu.memory_space<vmem>>, vector<1x256xf32>
    %227 = vector.broadcast %226 : vector<1x256xf32> to vector<8x256xf32>
    %228 = arith.mulf %223, %227 : vector<8x256xf32>
    %229 = arith.addf %201, %228 : vector<8x256xf32>
    %230 = vector.extract_strided_slice %1 {offsets = [0, 68], sizes = [8, 256], strides = [1, 1]} : vector<8x384xf32> to vector<8x256xf32>
    %c0_i32_166 = arith.constant 0 : i32
    %c0_i32_167 = arith.constant 0 : i32
    %c0_i32_168 = arith.constant 0 : i32
    %c0_i32_169 = arith.constant 0 : i32
    %231 = tpu.memref_slice %arg2[%c0_i32_166, %c0_i32_167, %c0_i32_168, %c0_i32_169] : memref<1x1x49x256xf32, #tpu.memory_space<vmem>> -> memref<1x1x49x256xf32, #tpu.memory_space<vmem>>
    %232 = tpu.memref_squeeze %231 : memref<1x1x49x256xf32, #tpu.memory_space<vmem>> -> memref<49x256xf32, #tpu.memory_space<vmem>>
    %c32 = arith.constant 32 : index
    %c0_170 = arith.constant 0 : index
    %233 = vector.load %232[%c32, %c0_170] : memref<49x256xf32, #tpu.memory_space<vmem>>, vector<1x256xf32>
    %234 = vector.broadcast %233 : vector<1x256xf32> to vector<8x256xf32>
    %235 = arith.mulf %230, %234 : vector<8x256xf32>
    %236 = arith.addf %208, %235 : vector<8x256xf32>
    %237 = vector.extract_strided_slice %1 {offsets = [0, 69], sizes = [8, 256], strides = [1, 1]} : vector<8x384xf32> to vector<8x256xf32>
    %c0_i32_171 = arith.constant 0 : i32
    %c0_i32_172 = arith.constant 0 : i32
    %c0_i32_173 = arith.constant 0 : i32
    %c0_i32_174 = arith.constant 0 : i32
    %238 = tpu.memref_slice %arg2[%c0_i32_171, %c0_i32_172, %c0_i32_173, %c0_i32_174] : memref<1x1x49x256xf32, #tpu.memory_space<vmem>> -> memref<1x1x49x256xf32, #tpu.memory_space<vmem>>
    %239 = tpu.memref_squeeze %238 : memref<1x1x49x256xf32, #tpu.memory_space<vmem>> -> memref<49x256xf32, #tpu.memory_space<vmem>>
    %c33 = arith.constant 33 : index
    %c0_175 = arith.constant 0 : index
    %240 = vector.load %239[%c33, %c0_175] : memref<49x256xf32, #tpu.memory_space<vmem>>, vector<1x256xf32>
    %241 = vector.broadcast %240 : vector<1x256xf32> to vector<8x256xf32>
    %242 = arith.mulf %237, %241 : vector<8x256xf32>
    %243 = arith.addf %215, %242 : vector<8x256xf32>
    %244 = vector.extract_strided_slice %1 {offsets = [0, 70], sizes = [8, 256], strides = [1, 1]} : vector<8x384xf32> to vector<8x256xf32>
    %c0_i32_176 = arith.constant 0 : i32
    %c0_i32_177 = arith.constant 0 : i32
    %c0_i32_178 = arith.constant 0 : i32
    %c0_i32_179 = arith.constant 0 : i32
    %245 = tpu.memref_slice %arg2[%c0_i32_176, %c0_i32_177, %c0_i32_178, %c0_i32_179] : memref<1x1x49x256xf32, #tpu.memory_space<vmem>> -> memref<1x1x49x256xf32, #tpu.memory_space<vmem>>
    %246 = tpu.memref_squeeze %245 : memref<1x1x49x256xf32, #tpu.memory_space<vmem>> -> memref<49x256xf32, #tpu.memory_space<vmem>>
    %c34 = arith.constant 34 : index
    %c0_180 = arith.constant 0 : index
    %247 = vector.load %246[%c34, %c0_180] : memref<49x256xf32, #tpu.memory_space<vmem>>, vector<1x256xf32>
    %248 = vector.broadcast %247 : vector<1x256xf32> to vector<8x256xf32>
    %249 = arith.mulf %244, %248 : vector<8x256xf32>
    %250 = arith.addf %222, %249 : vector<8x256xf32>
    %251 = vector.extract_strided_slice %1 {offsets = [0, 80], sizes = [8, 256], strides = [1, 1]} : vector<8x384xf32> to vector<8x256xf32>
    %c0_i32_181 = arith.constant 0 : i32
    %c0_i32_182 = arith.constant 0 : i32
    %c0_i32_183 = arith.constant 0 : i32
    %c0_i32_184 = arith.constant 0 : i32
    %252 = tpu.memref_slice %arg2[%c0_i32_181, %c0_i32_182, %c0_i32_183, %c0_i32_184] : memref<1x1x49x256xf32, #tpu.memory_space<vmem>> -> memref<1x1x49x256xf32, #tpu.memory_space<vmem>>
    %253 = tpu.memref_squeeze %252 : memref<1x1x49x256xf32, #tpu.memory_space<vmem>> -> memref<49x256xf32, #tpu.memory_space<vmem>>
    %c35 = arith.constant 35 : index
    %c0_185 = arith.constant 0 : index
    %254 = vector.load %253[%c35, %c0_185] : memref<49x256xf32, #tpu.memory_space<vmem>>, vector<1x256xf32>
    %255 = vector.broadcast %254 : vector<1x256xf32> to vector<8x256xf32>
    %256 = arith.mulf %251, %255 : vector<8x256xf32>
    %257 = arith.addf %229, %256 : vector<8x256xf32>
    %258 = vector.extract_strided_slice %1 {offsets = [0, 81], sizes = [8, 256], strides = [1, 1]} : vector<8x384xf32> to vector<8x256xf32>
    %c0_i32_186 = arith.constant 0 : i32
    %c0_i32_187 = arith.constant 0 : i32
    %c0_i32_188 = arith.constant 0 : i32
    %c0_i32_189 = arith.constant 0 : i32
    %259 = tpu.memref_slice %arg2[%c0_i32_186, %c0_i32_187, %c0_i32_188, %c0_i32_189] : memref<1x1x49x256xf32, #tpu.memory_space<vmem>> -> memref<1x1x49x256xf32, #tpu.memory_space<vmem>>
    %260 = tpu.memref_squeeze %259 : memref<1x1x49x256xf32, #tpu.memory_space<vmem>> -> memref<49x256xf32, #tpu.memory_space<vmem>>
    %c36 = arith.constant 36 : index
    %c0_190 = arith.constant 0 : index
    %261 = vector.load %260[%c36, %c0_190] : memref<49x256xf32, #tpu.memory_space<vmem>>, vector<1x256xf32>
    %262 = vector.broadcast %261 : vector<1x256xf32> to vector<8x256xf32>
    %263 = arith.mulf %258, %262 : vector<8x256xf32>
    %264 = arith.addf %236, %263 : vector<8x256xf32>
    %265 = vector.extract_strided_slice %1 {offsets = [0, 82], sizes = [8, 256], strides = [1, 1]} : vector<8x384xf32> to vector<8x256xf32>
    %c0_i32_191 = arith.constant 0 : i32
    %c0_i32_192 = arith.constant 0 : i32
    %c0_i32_193 = arith.constant 0 : i32
    %c0_i32_194 = arith.constant 0 : i32
    %266 = tpu.memref_slice %arg2[%c0_i32_191, %c0_i32_192, %c0_i32_193, %c0_i32_194] : memref<1x1x49x256xf32, #tpu.memory_space<vmem>> -> memref<1x1x49x256xf32, #tpu.memory_space<vmem>>
    %267 = tpu.memref_squeeze %266 : memref<1x1x49x256xf32, #tpu.memory_space<vmem>> -> memref<49x256xf32, #tpu.memory_space<vmem>>
    %c37 = arith.constant 37 : index
    %c0_195 = arith.constant 0 : index
    %268 = vector.load %267[%c37, %c0_195] : memref<49x256xf32, #tpu.memory_space<vmem>>, vector<1x256xf32>
    %269 = vector.broadcast %268 : vector<1x256xf32> to vector<8x256xf32>
    %270 = arith.mulf %265, %269 : vector<8x256xf32>
    %271 = arith.addf %243, %270 : vector<8x256xf32>
    %272 = vector.extract_strided_slice %1 {offsets = [0, 83], sizes = [8, 256], strides = [1, 1]} : vector<8x384xf32> to vector<8x256xf32>
    %c0_i32_196 = arith.constant 0 : i32
    %c0_i32_197 = arith.constant 0 : i32
    %c0_i32_198 = arith.constant 0 : i32
    %c0_i32_199 = arith.constant 0 : i32
    %273 = tpu.memref_slice %arg2[%c0_i32_196, %c0_i32_197, %c0_i32_198, %c0_i32_199] : memref<1x1x49x256xf32, #tpu.memory_space<vmem>> -> memref<1x1x49x256xf32, #tpu.memory_space<vmem>>
    %274 = tpu.memref_squeeze %273 : memref<1x1x49x256xf32, #tpu.memory_space<vmem>> -> memref<49x256xf32, #tpu.memory_space<vmem>>
    %c38 = arith.constant 38 : index
    %c0_200 = arith.constant 0 : index
    %275 = vector.load %274[%c38, %c0_200] : memref<49x256xf32, #tpu.memory_space<vmem>>, vector<1x256xf32>
    %276 = vector.broadcast %275 : vector<1x256xf32> to vector<8x256xf32>
    %277 = arith.mulf %272, %276 : vector<8x256xf32>
    %278 = arith.addf %250, %277 : vector<8x256xf32>
    %279 = vector.extract_strided_slice %1 {offsets = [0, 84], sizes = [8, 256], strides = [1, 1]} : vector<8x384xf32> to vector<8x256xf32>
    %c0_i32_201 = arith.constant 0 : i32
    %c0_i32_202 = arith.constant 0 : i32
    %c0_i32_203 = arith.constant 0 : i32
    %c0_i32_204 = arith.constant 0 : i32
    %280 = tpu.memref_slice %arg2[%c0_i32_201, %c0_i32_202, %c0_i32_203, %c0_i32_204] : memref<1x1x49x256xf32, #tpu.memory_space<vmem>> -> memref<1x1x49x256xf32, #tpu.memory_space<vmem>>
    %281 = tpu.memref_squeeze %280 : memref<1x1x49x256xf32, #tpu.memory_space<vmem>> -> memref<49x256xf32, #tpu.memory_space<vmem>>
    %c39 = arith.constant 39 : index
    %c0_205 = arith.constant 0 : index
    %282 = vector.load %281[%c39, %c0_205] : memref<49x256xf32, #tpu.memory_space<vmem>>, vector<1x256xf32>
    %283 = vector.broadcast %282 : vector<1x256xf32> to vector<8x256xf32>
    %284 = arith.mulf %279, %283 : vector<8x256xf32>
    %285 = arith.addf %257, %284 : vector<8x256xf32>
    %286 = vector.extract_strided_slice %1 {offsets = [0, 85], sizes = [8, 256], strides = [1, 1]} : vector<8x384xf32> to vector<8x256xf32>
    %c0_i32_206 = arith.constant 0 : i32
    %c0_i32_207 = arith.constant 0 : i32
    %c0_i32_208 = arith.constant 0 : i32
    %c0_i32_209 = arith.constant 0 : i32
    %287 = tpu.memref_slice %arg2[%c0_i32_206, %c0_i32_207, %c0_i32_208, %c0_i32_209] : memref<1x1x49x256xf32, #tpu.memory_space<vmem>> -> memref<1x1x49x256xf32, #tpu.memory_space<vmem>>
    %288 = tpu.memref_squeeze %287 : memref<1x1x49x256xf32, #tpu.memory_space<vmem>> -> memref<49x256xf32, #tpu.memory_space<vmem>>
    %c40 = arith.constant 40 : index
    %c0_210 = arith.constant 0 : index
    %289 = vector.load %288[%c40, %c0_210] : memref<49x256xf32, #tpu.memory_space<vmem>>, vector<1x256xf32>
    %290 = vector.broadcast %289 : vector<1x256xf32> to vector<8x256xf32>
    %291 = arith.mulf %286, %290 : vector<8x256xf32>
    %292 = arith.addf %264, %291 : vector<8x256xf32>
    %293 = vector.extract_strided_slice %1 {offsets = [0, 86], sizes = [8, 256], strides = [1, 1]} : vector<8x384xf32> to vector<8x256xf32>
    %c0_i32_211 = arith.constant 0 : i32
    %c0_i32_212 = arith.constant 0 : i32
    %c0_i32_213 = arith.constant 0 : i32
    %c0_i32_214 = arith.constant 0 : i32
    %294 = tpu.memref_slice %arg2[%c0_i32_211, %c0_i32_212, %c0_i32_213, %c0_i32_214] : memref<1x1x49x256xf32, #tpu.memory_space<vmem>> -> memref<1x1x49x256xf32, #tpu.memory_space<vmem>>
    %295 = tpu.memref_squeeze %294 : memref<1x1x49x256xf32, #tpu.memory_space<vmem>> -> memref<49x256xf32, #tpu.memory_space<vmem>>
    %c41 = arith.constant 41 : index
    %c0_215 = arith.constant 0 : index
    %296 = vector.load %295[%c41, %c0_215] : memref<49x256xf32, #tpu.memory_space<vmem>>, vector<1x256xf32>
    %297 = vector.broadcast %296 : vector<1x256xf32> to vector<8x256xf32>
    %298 = arith.mulf %293, %297 : vector<8x256xf32>
    %299 = arith.addf %271, %298 : vector<8x256xf32>
    %300 = vector.extract_strided_slice %1 {offsets = [0, 96], sizes = [8, 256], strides = [1, 1]} : vector<8x384xf32> to vector<8x256xf32>
    %c0_i32_216 = arith.constant 0 : i32
    %c0_i32_217 = arith.constant 0 : i32
    %c0_i32_218 = arith.constant 0 : i32
    %c0_i32_219 = arith.constant 0 : i32
    %301 = tpu.memref_slice %arg2[%c0_i32_216, %c0_i32_217, %c0_i32_218, %c0_i32_219] : memref<1x1x49x256xf32, #tpu.memory_space<vmem>> -> memref<1x1x49x256xf32, #tpu.memory_space<vmem>>
    %302 = tpu.memref_squeeze %301 : memref<1x1x49x256xf32, #tpu.memory_space<vmem>> -> memref<49x256xf32, #tpu.memory_space<vmem>>
    %c42 = arith.constant 42 : index
    %c0_220 = arith.constant 0 : index
    %303 = vector.load %302[%c42, %c0_220] : memref<49x256xf32, #tpu.memory_space<vmem>>, vector<1x256xf32>
    %304 = vector.broadcast %303 : vector<1x256xf32> to vector<8x256xf32>
    %305 = arith.mulf %300, %304 : vector<8x256xf32>
    %306 = arith.addf %278, %305 : vector<8x256xf32>
    %307 = vector.extract_strided_slice %1 {offsets = [0, 97], sizes = [8, 256], strides = [1, 1]} : vector<8x384xf32> to vector<8x256xf32>
    %c0_i32_221 = arith.constant 0 : i32
    %c0_i32_222 = arith.constant 0 : i32
    %c0_i32_223 = arith.constant 0 : i32
    %c0_i32_224 = arith.constant 0 : i32
    %308 = tpu.memref_slice %arg2[%c0_i32_221, %c0_i32_222, %c0_i32_223, %c0_i32_224] : memref<1x1x49x256xf32, #tpu.memory_space<vmem>> -> memref<1x1x49x256xf32, #tpu.memory_space<vmem>>
    %309 = tpu.memref_squeeze %308 : memref<1x1x49x256xf32, #tpu.memory_space<vmem>> -> memref<49x256xf32, #tpu.memory_space<vmem>>
    %c43 = arith.constant 43 : index
    %c0_225 = arith.constant 0 : index
    %310 = vector.load %309[%c43, %c0_225] : memref<49x256xf32, #tpu.memory_space<vmem>>, vector<1x256xf32>
    %311 = vector.broadcast %310 : vector<1x256xf32> to vector<8x256xf32>
    %312 = arith.mulf %307, %311 : vector<8x256xf32>
    %313 = arith.addf %285, %312 : vector<8x256xf32>
    %314 = vector.extract_strided_slice %1 {offsets = [0, 98], sizes = [8, 256], strides = [1, 1]} : vector<8x384xf32> to vector<8x256xf32>
    %c0_i32_226 = arith.constant 0 : i32
    %c0_i32_227 = arith.constant 0 : i32
    %c0_i32_228 = arith.constant 0 : i32
    %c0_i32_229 = arith.constant 0 : i32
    %315 = tpu.memref_slice %arg2[%c0_i32_226, %c0_i32_227, %c0_i32_228, %c0_i32_229] : memref<1x1x49x256xf32, #tpu.memory_space<vmem>> -> memref<1x1x49x256xf32, #tpu.memory_space<vmem>>
    %316 = tpu.memref_squeeze %315 : memref<1x1x49x256xf32, #tpu.memory_space<vmem>> -> memref<49x256xf32, #tpu.memory_space<vmem>>
    %c44 = arith.constant 44 : index
    %c0_230 = arith.constant 0 : index
    %317 = vector.load %316[%c44, %c0_230] : memref<49x256xf32, #tpu.memory_space<vmem>>, vector<1x256xf32>
    %318 = vector.broadcast %317 : vector<1x256xf32> to vector<8x256xf32>
    %319 = arith.mulf %314, %318 : vector<8x256xf32>
    %320 = arith.addf %292, %319 : vector<8x256xf32>
    %321 = vector.extract_strided_slice %1 {offsets = [0, 99], sizes = [8, 256], strides = [1, 1]} : vector<8x384xf32> to vector<8x256xf32>
    %c0_i32_231 = arith.constant 0 : i32
    %c0_i32_232 = arith.constant 0 : i32
    %c0_i32_233 = arith.constant 0 : i32
    %c0_i32_234 = arith.constant 0 : i32
    %322 = tpu.memref_slice %arg2[%c0_i32_231, %c0_i32_232, %c0_i32_233, %c0_i32_234] : memref<1x1x49x256xf32, #tpu.memory_space<vmem>> -> memref<1x1x49x256xf32, #tpu.memory_space<vmem>>
    %323 = tpu.memref_squeeze %322 : memref<1x1x49x256xf32, #tpu.memory_space<vmem>> -> memref<49x256xf32, #tpu.memory_space<vmem>>
    %c45 = arith.constant 45 : index
    %c0_235 = arith.constant 0 : index
    %324 = vector.load %323[%c45, %c0_235] : memref<49x256xf32, #tpu.memory_space<vmem>>, vector<1x256xf32>
    %325 = vector.broadcast %324 : vector<1x256xf32> to vector<8x256xf32>
    %326 = arith.mulf %321, %325 : vector<8x256xf32>
    %327 = arith.addf %299, %326 : vector<8x256xf32>
    %328 = vector.extract_strided_slice %1 {offsets = [0, 100], sizes = [8, 256], strides = [1, 1]} : vector<8x384xf32> to vector<8x256xf32>
    %c0_i32_236 = arith.constant 0 : i32
    %c0_i32_237 = arith.constant 0 : i32
    %c0_i32_238 = arith.constant 0 : i32
    %c0_i32_239 = arith.constant 0 : i32
    %329 = tpu.memref_slice %arg2[%c0_i32_236, %c0_i32_237, %c0_i32_238, %c0_i32_239] : memref<1x1x49x256xf32, #tpu.memory_space<vmem>> -> memref<1x1x49x256xf32, #tpu.memory_space<vmem>>
    %330 = tpu.memref_squeeze %329 : memref<1x1x49x256xf32, #tpu.memory_space<vmem>> -> memref<49x256xf32, #tpu.memory_space<vmem>>
    %c46 = arith.constant 46 : index
    %c0_240 = arith.constant 0 : index
    %331 = vector.load %330[%c46, %c0_240] : memref<49x256xf32, #tpu.memory_space<vmem>>, vector<1x256xf32>
    %332 = vector.broadcast %331 : vector<1x256xf32> to vector<8x256xf32>
    %333 = arith.mulf %328, %332 : vector<8x256xf32>
    %334 = arith.addf %306, %333 : vector<8x256xf32>
    %335 = vector.extract_strided_slice %1 {offsets = [0, 101], sizes = [8, 256], strides = [1, 1]} : vector<8x384xf32> to vector<8x256xf32>
    %c0_i32_241 = arith.constant 0 : i32
    %c0_i32_242 = arith.constant 0 : i32
    %c0_i32_243 = arith.constant 0 : i32
    %c0_i32_244 = arith.constant 0 : i32
    %336 = tpu.memref_slice %arg2[%c0_i32_241, %c0_i32_242, %c0_i32_243, %c0_i32_244] : memref<1x1x49x256xf32, #tpu.memory_space<vmem>> -> memref<1x1x49x256xf32, #tpu.memory_space<vmem>>
    %337 = tpu.memref_squeeze %336 : memref<1x1x49x256xf32, #tpu.memory_space<vmem>> -> memref<49x256xf32, #tpu.memory_space<vmem>>
    %c47 = arith.constant 47 : index
    %c0_245 = arith.constant 0 : index
    %338 = vector.load %337[%c47, %c0_245] : memref<49x256xf32, #tpu.memory_space<vmem>>, vector<1x256xf32>
    %339 = vector.broadcast %338 : vector<1x256xf32> to vector<8x256xf32>
    %340 = arith.mulf %335, %339 : vector<8x256xf32>
    %341 = arith.addf %313, %340 : vector<8x256xf32>
    %342 = vector.extract_strided_slice %1 {offsets = [0, 102], sizes = [8, 256], strides = [1, 1]} : vector<8x384xf32> to vector<8x256xf32>
    %c0_i32_246 = arith.constant 0 : i32
    %c0_i32_247 = arith.constant 0 : i32
    %c0_i32_248 = arith.constant 0 : i32
    %c0_i32_249 = arith.constant 0 : i32
    %343 = tpu.memref_slice %arg2[%c0_i32_246, %c0_i32_247, %c0_i32_248, %c0_i32_249] : memref<1x1x49x256xf32, #tpu.memory_space<vmem>> -> memref<1x1x49x256xf32, #tpu.memory_space<vmem>>
    %344 = tpu.memref_squeeze %343 : memref<1x1x49x256xf32, #tpu.memory_space<vmem>> -> memref<49x256xf32, #tpu.memory_space<vmem>>
    %c48 = arith.constant 48 : index
    %c0_250 = arith.constant 0 : index
    %345 = vector.load %344[%c48, %c0_250] : memref<49x256xf32, #tpu.memory_space<vmem>>, vector<1x256xf32>
    %346 = vector.broadcast %345 : vector<1x256xf32> to vector<8x256xf32>
    %347 = arith.mulf %342, %346 : vector<8x256xf32>
    %348 = arith.addf %320, %347 : vector<8x256xf32>
    %349 = arith.addf %348, %327 : vector<8x256xf32>
    %350 = arith.addf %349, %334 : vector<8x256xf32>
    %351 = arith.addf %350, %341 : vector<8x256xf32>
    %c0_251 = arith.constant 0 : index
    %c0_252 = arith.constant 0 : index
    %c0_253 = arith.constant 0 : index
    %c0_254 = arith.constant 0 : index
    %352 = vector.load %arg3[%c0_251, %c0_252, %c0_253, %c0_254] : memref<1x1x8x256xf32, #tpu.memory_space<vmem>>, vector<1x1x8x256xf32>
    %353 = vector.shape_cast %352 : vector<1x1x8x256xf32> to vector<8x256xf32>
    %354 = vector.shape_cast %351 : vector<8x256xf32> to vector<1x1x8x256xf32>
    tpu.vector_store %arg3[%c0_251, %c0_252, %c0_253, %c0_254], %354 {strides = array<i32>} : memref<1x1x8x256xf32, #tpu.memory_space<vmem>>, vector<1x1x8x256xf32>,
    return
  }
  func.func @transform_0(%arg0: i32) -> (i32, i32, i32, i32) {
    %c0_i32 = arith.constant 0 : i32
    %c0_i32_0 = arith.constant 0 : i32
    %c0_i32_1 = arith.constant 0 : i32
    %c0_i32_2 = arith.constant 0 : i32
    return %arg0, %c0_i32, %c0_i32_0, %c0_i32_1 : i32, i32, i32, i32
  }
  func.func @transform_1(%arg0: i32) -> (i32, i32, i32, i32) {
    %c0_i32 = arith.constant 0 : i32
    %c0_i32_0 = arith.constant 0 : i32
    %c0_i32_1 = arith.constant 0 : i32
    %c0_i32_2 = arith.constant 0 : i32
    return %arg0, %c0_i32, %c0_i32_0, %c0_i32_1 : i32, i32, i32, i32
  }
  func.func @transform_2(%arg0: i32) -> (i32, i32, i32, i32) {
    %c0_i32 = arith.constant 0 : i32
    %c0_i32_0 = arith.constant 0 : i32
    %c0_i32_1 = arith.constant 0 : i32
    %c0_i32_2 = arith.constant 0 : i32
    return %arg0, %c0_i32, %c0_i32_0, %c0_i32_1 : i32, i32, i32, i32
  }
}

</mosaic_0001>

<llo_original>
// kernel: involution2d_forward.1
$region0: #{involution2d_forward.1}
  #allocation0 [shape = 'u32[]', space=smem, size = 0x4, offset = 0x4, fixed_abs, tag = 'smem constant byte address 0x4 - core index']
  #allocation1 [shape = 'u32[144,128]{1,0:T(1,128)}', space=vmem, size = 0x12000, scoped, tag = 'internal scratch']
  %s0 = inlined_call_operand.vmem [shape: f32[2,1,8,384], index: 0, kind: input, shape index: {}]
  %s1 = inlined_call_operand.vmem [shape: f32[2,1,49,256], index: 1, kind: input, shape index: {}]
  %s2 = inlined_call_operand.vmem [shape: f32[2,1,8,256], index: 2, kind: output, shape index: {}]
  %s3 = sld [smem:[#allocation0]]
  $region41: #{involution2d_forward.1} parent=0
    _
  %s5 = ssub.s32 1, %s3
  %s6 = scalar_select 0, %s5, %s3
  loop: start=0, step=1, limit=4
  $region2: #{involution2d_forward.1} parent=0 // loop_pre_header
    _
  $region3: #{involution2d_forward.1} parent=0 // loop_header
    %s8 = sphi 0, %s12
    %p9 = scmp.ge.s32.totalorder %s8, 4
    %s18 = sphi 0, %s20
    %s21 = sphi 0, %s18
    %s22 = sphi 0, %s21
    %s38 = sphi 0, %s22
    %s44 = sphi 0, %s46
    %s47 = sphi 0, %s44
    %s48 = sphi 0, %s47
    %s64 = sphi 0, %s48
    %s70 = sphi 0, %s72
    %s73 = sphi 0, %s70
    %s74 = sphi 0, %s73
    %s90 = sphi 0, %s74
  $region4: #{involution2d_forward.1} parent=0 // loop_header_branch
    %11 = sbr.rel (%p9) target = $region8
  $region5: #{involution2d_forward.1} parent=0 // loop_body
    %s13 = ssub.s32 %s8, 1
    %s14 = ssub.s32 %s8, 2
    %s15 = sadd.s32 %s8, 1
    %s16 = ssub.s32 %s8, %s15
    %p17 = scmp.eq.s32.totalorder %s16, 0
    %s19 = sadd.s32 %s18, 1
    %s20 = scalar_select %p17, %s18, %s19
    %p23 = pneg %p17
    %p24 = scmp.eq.s32.totalorder %s8, 1
    %p25 = por %p23, %p24
    %p26 = scmp.ne.s32.totalorder %s18, %s21
    %p27 = scmp.eq.s32.totalorder %s8, 0
    %p28 = por %p26, %p27
    %p29 = scmp.ne.s32.totalorder %s18, %s21
    %p30 = scmp.eq.s32.totalorder %s13, 1
    %p31 = por %p29, %p30
    %p32 = scmp.ne.s32.totalorder %s21, %s22
    %p33 = scmp.eq.s32.totalorder %s13, 0
    %p34 = por %p32, %p33
    %p35 = scmp.ne.s32.totalorder %s21, %s22
    %p36 = scmp.eq.s32.totalorder %s14, 1
    %p37 = por %p35, %p36
    %p39 = scmp.ne.s32.totalorder %s22, %s38
    %p40 = scmp.eq.s32.totalorder %s14, 0
    %p41 = por %p39, %p40
    %s42 = ssub.s32 %s8, %s15
    %p43 = scmp.eq.s32.totalorder %s42, 0
    %s45 = sadd.s32 %s44, 1
    %s46 = scalar_select %p43, %s44, %s45
    %p49 = pneg %p43
    %p50 = scmp.eq.s32.totalorder %s8, 1
    %p51 = por %p49, %p50
    %p52 = scmp.ne.s32.totalorder %s44, %s47
    %p53 = scmp.eq.s32.totalorder %s8, 0
    %p54 = por %p52, %p53
    %p55 = scmp.ne.s32.totalorder %s44, %s47
    %p56 = scmp.eq.s32.totalorder %s13, 1
    %p57 = por %p55, %p56
    %p58 = scmp.ne.s32.totalorder %s47, %s48
    %p59 = scmp.eq.s32.totalorder %s13, 0
    %p60 = por %p58, %p59
    %p61 = scmp.ne.s32.totalorder %s47, %s48
    %p62 = scmp.eq.s32.totalorder %s14, 1
    %p63 = por %p61, %p62
    %p65 = scmp.ne.s32.totalorder %s48, %s64
    %p66 = scmp.eq.s32.totalorder %s14, 0
    %p67 = por %p65, %p66
    %s68 = ssub.s32 %s8, %s15
    %p69 = scmp.eq.s32.totalorder %s68, 0
    %s71 = sadd.s32 %s70, 1
    %s72 = scalar_select %p69, %s70, %s71
    %p75 = pneg %p69
    %p76 = scmp.eq.s32.totalorder %s8, 1
    %p77 = por %p75, %p76
    %p78 = scmp.ne.s32.totalorder %s70, %s73
    %p79 = scmp.eq.s32.totalorder %s8, 0
    %p80 = por %p78, %p79
    %p81 = scmp.ne.s32.totalorder %s70, %s73
    %p82 = scmp.eq.s32.totalorder %s13, 1
    %p83 = por %p81, %p82
    %p84 = scmp.ne.s32.totalorder %s73, %s74
    %p85 = scmp.eq.s32.totalorder %s13, 0
    %p86 = por %p84, %p85
    %p87 = scmp.ne.s32.totalorder %s73, %s74
    %p88 = scmp.eq.s32.totalorder %s14, 1
    %p89 = por %p87, %p88
    %p91 = scmp.ne.s32.totalorder %s74, %s90
    %p92 = scmp.eq.s32.totalorder %s14, 0
    %p93 = por %p91, %p92
    %p94 = scmp.le.s32.totalorder 1, %s8
    %p95 = scmp.lt.s32.totalorder %s8, 3
    %p96 = pnand %p94, %p95
    %p97 = pneg %p96
    // Predicated region
    $region9: #{involution2d_forward.1} parent=5 // pred_check
      _
    $region10: #{involution2d_forward.1} parent=5 // pred_check_branch
      %99 = sbr.rel (%p96) target = $region12
    $region11: #{involution2d_forward.1} parent=5 // pred_region
      %s100 = ssub.s32 %s8, 1
    $region12: #{involution2d_forward.1} parent=5 // pred_fallthru
      _
    %p101 = scmp.lt.s32.totalorder %s8, 2
    // Predicated region
    $region13: #{involution2d_forward.1} parent=5 // pred_check
      %p102 = pneg %p101
    $region14: #{involution2d_forward.1} parent=5 // pred_check_branch
      %104 = sbr.rel (%p102) target = $region16
    $region15: #{involution2d_forward.1} parent=5 // pred_region
      // Predicated region
      $region17: #{involution2d_forward.1} parent=15 // pred_check
        %p105 = pneg %p28
      $region18: #{involution2d_forward.1} parent=15 // pred_check_branch
        %107 = sbr.rel (%p105) target = $region20
      $region19: #{involution2d_forward.1} parent=15 // pred_region
        %p108 = scmp.lt.s32.totalorder %s8, 1
        %s109 = scalar_select %p108, %s8, 1
        %s110 = smul.addr %s109, 3
        %s111 = smul.addr %s110, 8
        %s112 = scalar_lea.vmem %s0, %s111
      $region20: #{involution2d_forward.1} parent=15 // pred_fallthru
        _
      // Predicated region
      $region21: #{involution2d_forward.1} parent=15 // pred_check
        %p113 = pneg %p54
      $region22: #{involution2d_forward.1} parent=15 // pred_check_branch
        %115 = sbr.rel (%p113) target = $region24
      $region23: #{involution2d_forward.1} parent=15 // pred_region
        %p116 = scmp.lt.s32.totalorder %s8, 1
        %s117 = scalar_select %p116, %s8, 1
        %s118 = smul.addr %s117, 14
        %s119 = smul.addr %s118, 8
        %s120 = scalar_lea.vmem %s1, %s119
      $region24: #{involution2d_forward.1} parent=15 // pred_fallthru
        _
    $region16: #{involution2d_forward.1} parent=5 // pred_fallthru
      _
    %p121 = scmp.le.s32.totalorder 1, %s8
    %p122 = scmp.lt.s32.totalorder %s8, 3
    %p123 = pnand %p121, %p122
    %p124 = pneg %p123
    // Predicated region
    $region25: #{involution2d_forward.1} parent=5 // pred_check
      _
    $region26: #{involution2d_forward.1} parent=5 // pred_check_branch
      %126 = sbr.rel (%p123) target = $region28
    $region27: #{involution2d_forward.1} parent=5 // pred_region
      %s127 = ssub.s32 %s8, 1
      %p128 = scmp.lt.s32.totalorder %s13, 1
      %s129 = scalar_select %p128, %s13, 1
      %s130 = smul.addr %s129, 3
      %s131 = smul.addr %s130, 8
      %s132 = scalar_lea.vmem %s0, %s131
      %p133 = pneg %p34
      %p134 = pneg %p31
      %p135 = scmp.lt.s32.totalorder %s13, 1
      %s136 = scalar_select %p135, %s13, 1
      %s137 = smul.addr %s136, 14
      %s138 = smul.addr %s137, 8
      %s139 = scalar_lea.vmem %s1, %s138
      %p140 = pneg %p60
      %p141 = pneg %p57
      %p142 = pneg %p86
      %p143 = pneg %p83
      %p144 = scmp.lt.s32.totalorder %s13, 1
      %s145 = scalar_select %p144, %s13, 1
      %s146 = smul.addr %s145, 2
      %s147 = smul.addr %s146, 8
      %s148 = scalar_lea.vmem %s2, %s147
      %p149 = scmp.lt.s32.totalorder %s13, 1
      %s150 = scalar_select %p149, %s13, 1
      %s151 = smul.addr %s150, 3
      %s152 = smul.addr %s151, 8
      %s153 = scalar_lea.vmem %s0, %s152
      %p154 = scmp.lt.s32.totalorder %s13, 1
      %s155 = scalar_select %p154, %s13, 1
      %s156 = smul.addr %s155, 14
      %s157 = smul.addr %s156, 8
      %s158 = scalar_lea.vmem %s1, %s157
      %p159 = scmp.lt.s32.totalorder %s13, 1
      %s160 = scalar_select %p159, %s13, 1
      %s161 = smul.addr %s160, 2
      %s162 = smul.addr %s161, 8
      %s163 = scalar_lea.vmem %s2, %s162
      %v164 = vld [vmem:[%s153] sm:$0xff]
      %v165 = vld [vmem:[%s153 + $0x8] sm:$0xff]
      %v166 = vld [vmem:[%s153 + $0x10] sm:$0xff]
      %v167 = vld [vmem:[%s158] ss:$8 sm:$0x3]
      %v169 = vlaneseq
      %v170 = vshrl.u32 %v169, 7
      %v171 = vsub.s32 0, %v170
      %v172 = vrot.slane %v167, %v171
      %v173 = vlaneseq
      %v174 = vshrl.u32 %v173, 7
      %v175 = vsub.s32 1, %v174
      %v176 = vrot.slane %v167, %v175
      %v179 = vmul.f32 %v164, %v172
      %v180 = vmul.f32 %v165, %v176
      %v181 = vadd.f32 %v179, 0.0
      %v182 = vadd.f32 %v180, 0.0
      %s183 = scalar_lea.vmem %s158, 1
      %v184 = vld [vmem:[%s183] ss:$8 sm:$0x3]
      %v186 = vlaneseq
      %v187 = vshrl.u32 %v186, 7
      %v188 = vsub.s32 0, %v187
      %v189 = vrot.slane %v184, %v188
      %v190 = vlaneseq
      %v191 = vshrl.u32 %v190, 7
      %v192 = vsub.s32 1, %v191
      %v193 = vrot.slane %v184, %v192
      %194 = vrot.lane.b32.xlu0 %v189, 1
      %v195 = vpop.permute.xlu0 %194
      %196 = vrot.lane.b32.xlu0 %v193, 1
      %v197 = vpop.permute.xlu0 %196
      %vm198 = vcmask 7168
      %v199 = vsel %vm198, %v195, %v197
      %v203 = vmul.f32 %v164, %v195
      %v204 = vmul.f32 %v165, %v199
      %v205 = vmul.f32 %v166, %v197
      %v206 = vadd.f32 %v203, 0.0
      %v207 = vadd.f32 %v204, 0.0
      %v208 = vadd.f32 %v205, 0.0
      %s209 = scalar_lea.vmem %s158, 2
      %v210 = vld [vmem:[%s209] ss:$8 sm:$0x3]
      %v212 = vlaneseq
      %v213 = vshrl.u32 %v212, 7
      %v214 = vsub.s32 0, %v213
      %v215 = vrot.slane %v210, %v214
      %v216 = vlaneseq
      %v217 = vshrl.u32 %v216, 7
      %v218 = vsub.s32 1, %v217
      %v219 = vrot.slane %v210, %v218
      %220 = vrot.lane.b32.xlu0 %v215, 2
      %v221 = vpop.permute.xlu0 %220
      %222 = vrot.lane.b32.xlu0 %v219, 2
      %v223 = vpop.permute.xlu0 %222
      %vm224 = vcmask 15360
      %v225 = vsel %vm224, %v221, %v223
      %v229 = vmul.f32 %v164, %v221
      %v230 = vmul.f32 %v165, %v225
      %v231 = vmul.f32 %v166, %v223
      %v232 = vadd.f32 %v229, 0.0
      %v233 = vadd.f32 %v230, 0.0
      %v234 = vadd.f32 %v231, 0.0
      %s235 = scalar_lea.vmem %s158, 3
      %v236 = vld [vmem:[%s235] ss:$8 sm:$0x3]
      %v238 = vlaneseq
      %v239 = vshrl.u32 %v238, 7
      %v240 = vsub.s32 0, %v239
      %v241 = vrot.slane %v236, %v240
      %v242 = vlaneseq
      %v243 = vshrl.u32 %v242, 7
      %v244 = vsub.s32 1, %v243
      %v245 = vrot.slane %v236, %v244
      %246 = vrot.lane.b32.xlu0 %v241, 3
      %v247 = vpop.permute.xlu0 %246
      %248 = vrot.lane.b32.xlu0 %v245, 3
      %v249 = vpop.permute.xlu0 %248
      %vm250 = vcmask 23552
      %v251 = vsel %vm250, %v247, %v249
      %v255 = vmul.f32 %v164, %v247
      %v256 = vmul.f32 %v165, %v251
      %v257 = vmul.f32 %v166, %v249
      %v258 = vadd.f32 %v255, 0.0
      %v259 = vadd.f32 %v256, 0.0
      %v260 = vadd.f32 %v257, 0.0
      %s261 = scalar_lea.vmem %s158, 4
      %v262 = vld [vmem:[%s261] ss:$8 sm:$0x3]
      %v264 = vlaneseq
      %v265 = vshrl.u32 %v264, 7
      %v266 = vsub.s32 0, %v265
      %v267 = vrot.slane %v262, %v266
      %v268 = vlaneseq
      %v269 = vshrl.u32 %v268, 7
      %v270 = vsub.s32 1, %v269
      %v271 = vrot.slane %v262, %v270
      %272 = vrot.lane.b32.xlu0 %v267, 4
      %v273 = vpop.permute.xlu0 %272
      %274 = vrot.lane.b32.xlu0 %v271, 4
      %v275 = vpop.permute.xlu0 %274
      %vm276 = vcmask 31744
      %v277 = vsel %vm276, %v273, %v275
      %v281 = vmul.f32 %v164, %v273
      %v282 = vmul.f32 %v165, %v277
      %v283 = vmul.f32 %v166, %v275
      %287 = vrot.lane.b32.xlu0 %v281, 124
      %v288 = vpop.permute.xlu0 %287
      %289 = vrot.lane.b32.xlu0 %v282, 124
      %v290 = vpop.permute.xlu0 %289
      %291 = vrot.lane.b32.xlu0 %v283, 124
      %v292 = vpop.permute.xlu0 %291
      %vm293 = vcmask 1014784
      %v294 = vsel %vm293, %v288, %v290
      %v295 = vsel %vm293, %v290, %v292
      %v298 = vadd.f32 %v181, %v294
      %v299 = vadd.f32 %v182, %v295
      %s300 = scalar_lea.vmem %s158, 5
      %v301 = vld [vmem:[%s300] ss:$8 sm:$0x3]
      %v303 = vlaneseq
      %v304 = vshrl.u32 %v303, 7
      %v305 = vsub.s32 0, %v304
      %v306 = vrot.slane %v301, %v305
      %v307 = vlaneseq
      %v308 = vshrl.u32 %v307, 7
      %v309 = vsub.s32 1, %v308
      %v310 = vrot.slane %v301, %v309
      %311 = vrot.lane.b32.xlu0 %v306, 5
      %v312 = vpop.permute.xlu0 %311
      %313 = vrot.lane.b32.xlu0 %v310, 5
      %v314 = vpop.permute.xlu0 %313
      %vm315 = vcmask 39936
      %v316 = vsel %vm315, %v312, %v314
      %v320 = vmul.f32 %v164, %v312
      %v321 = vmul.f32 %v165, %v316
      %v322 = vmul.f32 %v166, %v314
      %326 = vrot.lane.b32.xlu0 %v320, 124
      %v327 = vpop.permute.xlu0 %326
      %328 = vrot.lane.b32.xlu0 %v321, 124
      %v329 = vpop.permute.xlu0 %328
      %330 = vrot.lane.b32.xlu0 %v322, 124
      %v331 = vpop.permute.xlu0 %330
      %v332 = vsel %vm293, %v327, %v329
      %v333 = vsel %vm293, %v329, %v331
      %v337 = vadd.f32 %v206, %v332
      %v338 = vadd.f32 %v207, %v333
      %v339 = vadd.f32 %v208, %v331
      %s340 = scalar_lea.vmem %s158, 6
      %v341 = vld [vmem:[%s340] ss:$8 sm:$0x3]
      %v343 = vlaneseq
      %v344 = vshrl.u32 %v343, 7
      %v345 = vsub.s32 0, %v344
      %v346 = vrot.slane %v341, %v345
      %v347 = vlaneseq
      %v348 = vshrl.u32 %v347, 7
      %v349 = vsub.s32 1, %v348
      %v350 = vrot.slane %v341, %v349
      %351 = vrot.lane.b32.xlu0 %v346, 6
      %v352 = vpop.permute.xlu0 %351
      %353 = vrot.lane.b32.xlu0 %v350, 6
      %v354 = vpop.permute.xlu0 %353
      %vm355 = vcmask 48128
      %v356 = vsel %vm355, %v352, %v354
      %v360 = vmul.f32 %v164, %v352
      %v361 = vmul.f32 %v165, %v356
      %v362 = vmul.f32 %v166, %v354
      %366 = vrot.lane.b32.xlu0 %v360, 124
      %v367 = vpop.permute.xlu0 %366
      %368 = vrot.lane.b32.xlu0 %v361, 124
      %v369 = vpop.permute.xlu0 %368
      %370 = vrot.lane.b32.xlu0 %v362, 124
      %v371 = vpop.permute.xlu0 %370
      %v372 = vsel %vm293, %v367, %v369
      %v373 = vsel %vm293, %v369, %v371
      %v377 = vadd.f32 %v232, %v372
      %v378 = vadd.f32 %v233, %v373
      %v379 = vadd.f32 %v234, %v371
      %s380 = scalar_lea.vmem %s158, 7
      %v381 = vld [vmem:[%s380] ss:$8 sm:$0x3]
      %v383 = vlaneseq
      %v384 = vshrl.u32 %v383, 7
      %v385 = vsub.s32 0, %v384
      %v386 = vrot.slane %v381, %v385
      %v387 = vlaneseq
      %v388 = vshrl.u32 %v387, 7
      %v389 = vsub.s32 1, %v388
      %v390 = vrot.slane %v381, %v389
      %391 = vrot.lane.b32.xlu0 %v386, 16
      %v392 = vpop.permute.xlu0 %391
      %393 = vrot.lane.b32.xlu0 %v390, 16
      %v394 = vpop.permute.xlu0 %393
      %vm395 = vcmask 130048
      %v396 = vsel %vm395, %v392, %v394
      %v400 = vmul.f32 %v164, %v392
      %v401 = vmul.f32 %v165, %v396
      %v402 = vmul.f32 %v166, %v394
      %406 = vrot.lane.b32.xlu0 %v400, 115
      %v407 = vpop.permute.xlu0 %406
      %408 = vrot.lane.b32.xlu0 %v401, 115
      %v409 = vpop.permute.xlu0 %408
      %410 = vrot.lane.b32.xlu0 %v402, 115
      %v411 = vpop.permute.xlu0 %410
      %vm412 = vcmask 941056
      %v413 = vsel %vm412, %v407, %v409
      %v414 = vsel %vm412, %v409, %v411
      %v418 = vadd.f32 %v258, %v413
      %v419 = vadd.f32 %v259, %v414
      %v420 = vadd.f32 %v260, %v411
      %s421 = scalar_lea.vmem %s158, 16
      %v422 = vld [vmem:[%s421] ss:$8 sm:$0x3]
      %v424 = vlaneseq
      %v425 = vshrl.u32 %v424, 7
      %v426 = vsub.s32 0, %v425
      %v427 = vrot.slane %v422, %v426
      %v428 = vlaneseq
      %v429 = vshrl.u32 %v428, 7
      %v430 = vsub.s32 1, %v429
      %v431 = vrot.slane %v422, %v430
      %432 = vrot.lane.b32.xlu0 %v427, 17
      %v433 = vpop.permute.xlu0 %432
      %434 = vrot.lane.b32.xlu0 %v431, 17
      %v435 = vpop.permute.xlu0 %434
      %vm436 = vcmask 138240
      %v437 = vsel %vm436, %v433, %v435
      %v441 = vmul.f32 %v164, %v433
      %v442 = vmul.f32 %v165, %v437
      %v443 = vmul.f32 %v166, %v435
      %447 = vrot.lane.b32.xlu0 %v441, 111
      %v448 = vpop.permute.xlu0 %447
      %449 = vrot.lane.b32.xlu0 %v442, 111
      %v450 = vpop.permute.xlu0 %449
      %451 = vrot.lane.b32.xlu0 %v443, 111
      %v452 = vpop.permute.xlu0 %451
      %vm453 = vcmask 908288
      %v454 = vsel %vm453, %v448, %v450
      %v455 = vsel %vm453, %v450, %v452
      %v458 = vadd.f32 %v298, %v454
      %v459 = vadd.f32 %v299, %v455
      %s460 = scalar_lea.vmem %s158, 17
      %v461 = vld [vmem:[%s460] ss:$8 sm:$0x3]
      %v463 = vlaneseq
      %v464 = vshrl.u32 %v463, 7
      %v465 = vsub.s32 0, %v464
      %v466 = vrot.slane %v461, %v465
      %v467 = vlaneseq
      %v468 = vshrl.u32 %v467, 7
      %v469 = vsub.s32 1, %v468
      %v470 = vrot.slane %v461, %v469
      %471 = vrot.lane.b32.xlu0 %v466, 18
      %v472 = vpop.permute.xlu0 %471
      %473 = vrot.lane.b32.xlu0 %v470, 18
      %v474 = vpop.permute.xlu0 %473
      %vm475 = vcmask 146432
      %v476 = vsel %vm475, %v472, %v474
      %v480 = vmul.f32 %v164, %v472
      %v481 = vmul.f32 %v165, %v476
      %v482 = vmul.f32 %v166, %v474
      %486 = vrot.lane.b32.xlu0 %v480, 111
      %v487 = vpop.permute.xlu0 %486
      %488 = vrot.lane.b32.xlu0 %v481, 111
      %v489 = vpop.permute.xlu0 %488
      %490 = vrot.lane.b32.xlu0 %v482, 111
      %v491 = vpop.permute.xlu0 %490
      %v492 = vsel %vm453, %v487, %v489
      %v493 = vsel %vm453, %v489, %v491
      %v497 = vadd.f32 %v337, %v492
      %v498 = vadd.f32 %v338, %v493
      %v499 = vadd.f32 %v339, %v491
      %s500 = scalar_lea.vmem %s158, 18
      %v501 = vld [vmem:[%s500] ss:$8 sm:$0x3]
      %v503 = vlaneseq
      %v504 = vshrl.u32 %v503, 7
      %v505 = vsub.s32 0, %v504
      %v506 = vrot.slane %v501, %v505
      %v507 = vlaneseq
      %v508 = vshrl.u32 %v507, 7
      %v509 = vsub.s32 1, %v508
      %v510 = vrot.slane %v501, %v509
      %511 = vrot.lane.b32.xlu0 %v506, 19
      %v512 = vpop.permute.xlu0 %511
      %513 = vrot.lane.b32.xlu0 %v510, 19
      %v514 = vpop.permute.xlu0 %513
      %vm515 = vcmask 154624
      %v516 = vsel %vm515, %v512, %v514
      %v520 = vmul.f32 %v164, %v512
      %v521 = vmul.f32 %v165, %v516
      %v522 = vmul.f32 %v166, %v514
      %526 = vrot.lane.b32.xlu0 %v520, 111
      %v527 = vpop.permute.xlu0 %526
      %528 = vrot.lane.b32.xlu0 %v521, 111
      %v529 = vpop.permute.xlu0 %528
      %530 = vrot.lane.b32.xlu0 %v522, 111
      %v531 = vpop.permute.xlu0 %530
      %v532 = vsel %vm453, %v527, %v529
      %v533 = vsel %vm453, %v529, %v531
      %v537 = vadd.f32 %v377, %v532
      %v538 = vadd.f32 %v378, %v533
      %v539 = vadd.f32 %v379, %v531
      %s540 = scalar_lea.vmem %s158, 19
      %v541 = vld [vmem:[%s540] ss:$8 sm:$0x3]
      %v543 = vlaneseq
      %v544 = vshrl.u32 %v543, 7
      %v545 = vsub.s32 0, %v544
      %v546 = vrot.slane %v541, %v545
      %v547 = vlaneseq
      %v548 = vshrl.u32 %v547, 7
      %v549 = vsub.s32 1, %v548
      %v550 = vrot.slane %v541, %v549
      %551 = vrot.lane.b32.xlu0 %v546, 20
      %v552 = vpop.permute.xlu0 %551
      %553 = vrot.lane.b32.xlu0 %v550, 20
      %v554 = vpop.permute.xlu0 %553
      %vm555 = vcmask 162816
      %v556 = vsel %vm555, %v552, %v554
      %v560 = vmul.f32 %v164, %v552
      %v561 = vmul.f32 %v165, %v556
      %v562 = vmul.f32 %v166, %v554
      %566 = vrot.lane.b32.xlu0 %v560, 111
      %v567 = vpop.permute.xlu0 %566
      %568 = vrot.lane.b32.xlu0 %v561, 111
      %v569 = vpop.permute.xlu0 %568
      %570 = vrot.lane.b32.xlu0 %v562, 111
      %v571 = vpop.permute.xlu0 %570
      %v572 = vsel %vm453, %v567, %v569
      %v573 = vsel %vm453, %v569, %v571
      %v577 = vadd.f32 %v418, %v572
      %v578 = vadd.f32 %v419, %v573
      %v579 = vadd.f32 %v420, %v571
      %s580 = scalar_lea.vmem %s158, 20
      %v581 = vld [vmem:[%s580] ss:$8 sm:$0x3]
      %v583 = vlaneseq
      %v584 = vshrl.u32 %v583, 7
      %v585 = vsub.s32 0, %v584
      %v586 = vrot.slane %v581, %v585
      %v587 = vlaneseq
      %v588 = vshrl.u32 %v587, 7
      %v589 = vsub.s32 1, %v588
      %v590 = vrot.slane %v581, %v589
      %591 = vrot.lane.b32.xlu0 %v586, 21
      %v592 = vpop.permute.xlu0 %591
      %593 = vrot.lane.b32.xlu0 %v590, 21
      %v594 = vpop.permute.xlu0 %593
      %vm595 = vcmask 171008
      %v596 = vsel %vm595, %v592, %v594
      %v600 = vmul.f32 %v164, %v592
      %v601 = vmul.f32 %v165, %v596
      %v602 = vmul.f32 %v166, %v594
      %606 = vrot.lane.b32.xlu0 %v600, 107
      %v607 = vpop.permute.xlu0 %606
      %608 = vrot.lane.b32.xlu0 %v601, 107
      %v609 = vpop.permute.xlu0 %608
      %610 = vrot.lane.b32.xlu0 %v602, 107
      %v611 = vpop.permute.xlu0 %610
      %vm612 = vcmask 875520
      %v613 = vsel %vm612, %v607, %v609
      %v614 = vsel %vm612, %v609, %v611
      %v617 = vadd.f32 %v458, %v613
      %v618 = vadd.f32 %v459, %v614
      %s619 = scalar_lea.vmem %s158, 21
      %v620 = vld [vmem:[%s619] ss:$8 sm:$0x3]
      %v622 = vlaneseq
      %v623 = vshrl.u32 %v622, 7
      %v624 = vsub.s32 0, %v623
      %v625 = vrot.slane %v620, %v624
      %v626 = vlaneseq
      %v627 = vshrl.u32 %v626, 7
      %v628 = vsub.s32 1, %v627
      %v629 = vrot.slane %v620, %v628
      %630 = vrot.lane.b32.xlu0 %v625, 22
      %v631 = vpop.permute.xlu0 %630
      %632 = vrot.lane.b32.xlu0 %v629, 22
      %v633 = vpop.permute.xlu0 %632
      %vm634 = vcmask 179200
      %v635 = vsel %vm634, %v631, %v633
      %v639 = vmul.f32 %v164, %v631
      %v640 = vmul.f32 %v165, %v635
      %v641 = vmul.f32 %v166, %v633
      %645 = vrot.lane.b32.xlu0 %v639, 107
      %v646 = vpop.permute.xlu0 %645
      %647 = vrot.lane.b32.xlu0 %v640, 107
      %v648 = vpop.permute.xlu0 %647
      %649 = vrot.lane.b32.xlu0 %v641, 107
      %v650 = vpop.permute.xlu0 %649
      %v651 = vsel %vm612, %v646, %v648
      %v652 = vsel %vm612, %v648, %v650
      %v656 = vadd.f32 %v497, %v651
      %v657 = vadd.f32 %v498, %v652
      %v658 = vadd.f32 %v499, %v650
      %s659 = scalar_lea.vmem %s158, 22
      %v660 = vld [vmem:[%s659] ss:$8 sm:$0x3]
      %v662 = vlaneseq
      %v663 = vshrl.u32 %v662, 7
      %v664 = vsub.s32 0, %v663
      %v665 = vrot.slane %v660, %v664
      %v666 = vlaneseq
      %v667 = vshrl.u32 %v666, 7
      %v668 = vsub.s32 1, %v667
      %v669 = vrot.slane %v660, %v668
      %670 = vrot.lane.b32.xlu0 %v665, 32
      %v671 = vpop.permute.xlu0 %670
      %672 = vrot.lane.b32.xlu0 %v669, 32
      %v673 = vpop.permute.xlu0 %672
      %vm674 = vcmask 261120
      %v675 = vsel %vm674, %v671, %v673
      %v679 = vmul.f32 %v164, %v671
      %v680 = vmul.f32 %v165, %v675
      %v681 = vmul.f32 %v166, %v673
      %685 = vrot.lane.b32.xlu0 %v679, 98
      %v686 = vpop.permute.xlu0 %685
      %687 = vrot.lane.b32.xlu0 %v680, 98
      %v688 = vpop.permute.xlu0 %687
      %689 = vrot.lane.b32.xlu0 %v681, 98
      %v690 = vpop.permute.xlu0 %689
      %vm691 = vcmask 801792
      %v692 = vsel %vm691, %v686, %v688
      %v693 = vsel %vm691, %v688, %v690
      %v697 = vadd.f32 %v537, %v692
      %v698 = vadd.f32 %v538, %v693
      %v699 = vadd.f32 %v539, %v690
      %s700 = scalar_lea.vmem %s158, 23
      %v701 = vld [vmem:[%s700] ss:$8 sm:$0x3]
      %v703 = vlaneseq
      %v704 = vshrl.u32 %v703, 7
      %v705 = vsub.s32 0, %v704
      %v706 = vrot.slane %v701, %v705
      %v707 = vlaneseq
      %v708 = vshrl.u32 %v707, 7
      %v709 = vsub.s32 1, %v708
      %v710 = vrot.slane %v701, %v709
      %711 = vrot.lane.b32.xlu0 %v706, 33
      %v712 = vpop.permute.xlu0 %711
      %713 = vrot.lane.b32.xlu0 %v710, 33
      %v714 = vpop.permute.xlu0 %713
      %vm715 = vcmask 269312
      %v716 = vsel %vm715, %v712, %v714
      %v720 = vmul.f32 %v164, %v712
      %v721 = vmul.f32 %v165, %v716
      %v722 = vmul.f32 %v166, %v714
      %726 = vrot.lane.b32.xlu0 %v720, 98
      %v727 = vpop.permute.xlu0 %726
      %728 = vrot.lane.b32.xlu0 %v721, 98
      %v729 = vpop.permute.xlu0 %728
      %730 = vrot.lane.b32.xlu0 %v722, 98
      %v731 = vpop.permute.xlu0 %730
      %v732 = vsel %vm691, %v727, %v729
      %v733 = vsel %vm691, %v729, %v731
      %v737 = vadd.f32 %v577, %v732
      %v738 = vadd.f32 %v578, %v733
      %v739 = vadd.f32 %v579, %v731
      %s740 = scalar_lea.vmem %s158, 32
      %v741 = vld [vmem:[%s740] ss:$8 sm:$0x3]
      %v743 = vlaneseq
      %v744 = vshrl.u32 %v743, 7
      %v745 = vsub.s32 0, %v744
      %v746 = vrot.slane %v741, %v745
      %v747 = vlaneseq
      %v748 = vshrl.u32 %v747, 7
      %v749 = vsub.s32 1, %v748
      %v750 = vrot.slane %v741, %v749
      %751 = vrot.lane.b32.xlu0 %v746, 34
      %v752 = vpop.permute.xlu0 %751
      %753 = vrot.lane.b32.xlu0 %v750, 34
      %v754 = vpop.permute.xlu0 %753
      %vm755 = vcmask 277504
      %v756 = vsel %vm755, %v752, %v754
      %v760 = vmul.f32 %v164, %v752
      %v761 = vmul.f32 %v165, %v756
      %v762 = vmul.f32 %v166, %v754
      %766 = vrot.lane.b32.xlu0 %v760, 94
      %v767 = vpop.permute.xlu0 %766
      %768 = vrot.lane.b32.xlu0 %v761, 94
      %v769 = vpop.permute.xlu0 %768
      %770 = vrot.lane.b32.xlu0 %v762, 94
      %v771 = vpop.permute.xlu0 %770
      %vm772 = vcmask 769024
      %v773 = vsel %vm772, %v767, %v769
      %v774 = vsel %vm772, %v769, %v771
      %v777 = vadd.f32 %v617, %v773
      %v778 = vadd.f32 %v618, %v774
      %s779 = scalar_lea.vmem %s158, 33
      %v780 = vld [vmem:[%s779] ss:$8 sm:$0x3]
      %v782 = vlaneseq
      %v783 = vshrl.u32 %v782, 7
      %v784 = vsub.s32 0, %v783
      %v785 = vrot.slane %v780, %v784
      %v786 = vlaneseq
      %v787 = vshrl.u32 %v786, 7
      %v788 = vsub.s32 1, %v787
      %v789 = vrot.slane %v780, %v788
      %790 = vrot.lane.b32.xlu0 %v785, 35
      %v791 = vpop.permute.xlu0 %790
      %792 = vrot.lane.b32.xlu0 %v789, 35
      %v793 = vpop.permute.xlu0 %792
      %vm794 = vcmask 285696
      %v795 = vsel %vm794, %v791, %v793
      %v799 = vmul.f32 %v164, %v791
      %v800 = vmul.f32 %v165, %v795
      %v801 = vmul.f32 %v166, %v793
      %805 = vrot.lane.b32.xlu0 %v799, 94
      %v806 = vpop.permute.xlu0 %805
      %807 = vrot.lane.b32.xlu0 %v800, 94
      %v808 = vpop.permute.xlu0 %807
      %809 = vrot.lane.b32.xlu0 %v801, 94
      %v810 = vpop.permute.xlu0 %809
      %v811 = vsel %vm772, %v806, %v808
      %v812 = vsel %vm772, %v808, %v810
      %v816 = vadd.f32 %v656, %v811
      %v817 = vadd.f32 %v657, %v812
      %v818 = vadd.f32 %v658, %v810
      %s819 = scalar_lea.vmem %s158, 34
      %v820 = vld [vmem:[%s819] ss:$8 sm:$0x3]
      %v822 = vlaneseq
      %v823 = vshrl.u32 %v822, 7
      %v824 = vsub.s32 0, %v823
      %v825 = vrot.slane %v820, %v824
      %v826 = vlaneseq
      %v827 = vshrl.u32 %v826, 7
      %v828 = vsub.s32 1, %v827
      %v829 = vrot.slane %v820, %v828
      %830 = vrot.lane.b32.xlu0 %v825, 36
      %v831 = vpop.permute.xlu0 %830
      %832 = vrot.lane.b32.xlu0 %v829, 36
      %v833 = vpop.permute.xlu0 %832
      %vm834 = vcmask 293888
      %v835 = vsel %vm834, %v831, %v833
      %v839 = vmul.f32 %v164, %v831
      %v840 = vmul.f32 %v165, %v835
      %v841 = vmul.f32 %v166, %v833
      %845 = vrot.lane.b32.xlu0 %v839, 94
      %v846 = vpop.permute.xlu0 %845
      %847 = vrot.lane.b32.xlu0 %v840, 94
      %v848 = vpop.permute.xlu0 %847
      %849 = vrot.lane.b32.xlu0 %v841, 94
      %v850 = vpop.permute.xlu0 %849
      %v851 = vsel %vm772, %v846, %v848
      %v852 = vsel %vm772, %v848, %v850
      %v856 = vadd.f32 %v697, %v851
      %v857 = vadd.f32 %v698, %v852
      %v858 = vadd.f32 %v699, %v850
      %s859 = scalar_lea.vmem %s158, 35
      %v860 = vld [vmem:[%s859] ss:$8 sm:$0x3]
      %v862 = vlaneseq
      %v863 = vshrl.u32 %v862, 7
      %v864 = vsub.s32 0, %v863
      %v865 = vrot.slane %v860, %v864
      %v866 = vlaneseq
      %v867 = vshrl.u32 %v866, 7
      %v868 = vsub.s32 1, %v867
      %v869 = vrot.slane %v860, %v868
      %870 = vrot.lane.b32.xlu0 %v865, 37
      %v871 = vpop.permute.xlu0 %870
      %872 = vrot.lane.b32.xlu0 %v869, 37
      %v873 = vpop.permute.xlu0 %872
      %vm874 = vcmask 302080
      %v875 = vsel %vm874, %v871, %v873
      %v879 = vmul.f32 %v164, %v871
      %v880 = vmul.f32 %v165, %v875
      %v881 = vmul.f32 %v166, %v873
      %885 = vrot.lane.b32.xlu0 %v879, 94
      %v886 = vpop.permute.xlu0 %885
      %887 = vrot.lane.b32.xlu0 %v880, 94
      %v888 = vpop.permute.xlu0 %887
      %889 = vrot.lane.b32.xlu0 %v881, 94
      %v890 = vpop.permute.xlu0 %889
      %v891 = vsel %vm772, %v886, %v888
      %v892 = vsel %vm772, %v888, %v890
      %v896 = vadd.f32 %v737, %v891
      %v897 = vadd.f32 %v738, %v892
      %v898 = vadd.f32 %v739, %v890
      %s899 = scalar_lea.vmem %s158, 36
      %v900 = vld [vmem:[%s899] ss:$8 sm:$0x3]
      %v902 = vlaneseq
      %v903 = vshrl.u32 %v902, 7
      %v904 = vsub.s32 0, %v903
      %v905 = vrot.slane %v900, %v904
      %v906 = vlaneseq
      %v907 = vshrl.u32 %v906, 7
      %v908 = vsub.s32 1, %v907
      %v909 = vrot.slane %v900, %v908
      %910 = vrot.lane.b32.xlu0 %v905, 38
      %v911 = vpop.permute.xlu0 %910
      %912 = vrot.lane.b32.xlu0 %v909, 38
      %v913 = vpop.permute.xlu0 %912
      %vm914 = vcmask 310272
      %v915 = vsel %vm914, %v911, %v913
      %v919 = vmul.f32 %v164, %v911
      %v920 = vmul.f32 %v165, %v915
      %v921 = vmul.f32 %v166, %v913
      %925 = vrot.lane.b32.xlu0 %v919, 90
      %v926 = vpop.permute.xlu0 %925
      %927 = vrot.lane.b32.xlu0 %v920, 90
      %v928 = vpop.permute.xlu0 %927
      %929 = vrot.lane.b32.xlu0 %v921, 90
      %v930 = vpop.permute.xlu0 %929
      %vm931 = vcmask 736256
      %v932 = vsel %vm931, %v926, %v928
      %v933 = vsel %vm931, %v928, %v930
      %v936 = vadd.f32 %v777, %v932
      %v937 = vadd.f32 %v778, %v933
      %s938 = scalar_lea.vmem %s158, 37
      %v939 = vld [vmem:[%s938] ss:$8 sm:$0x3]
      %v941 = vlaneseq
      %v942 = vshrl.u32 %v941, 7
      %v943 = vsub.s32 0, %v942
      %v944 = vrot.slane %v939, %v943
      %v945 = vlaneseq
      %v946 = vshrl.u32 %v945, 7
      %v947 = vsub.s32 1, %v946
      %v948 = vrot.slane %v939, %v947
      %949 = vrot.lane.b32.xlu0 %v944, 48
      %v950 = vpop.permute.xlu0 %949
      %951 = vrot.lane.b32.xlu0 %v948, 48
      %v952 = vpop.permute.xlu0 %951
      %vm953 = vcmask 392192
      %v954 = vsel %vm953, %v950, %v952
      %v958 = vmul.f32 %v164, %v950
      %v959 = vmul.f32 %v165, %v954
      %v960 = vmul.f32 %v166, %v952
      %964 = vrot.lane.b32.xlu0 %v958, 81
      %v965 = vpop.permute.xlu0 %964
      %966 = vrot.lane.b32.xlu0 %v959, 81
      %v967 = vpop.permute.xlu0 %966
      %968 = vrot.lane.b32.xlu0 %v960, 81
      %v969 = vpop.permute.xlu0 %968
      %vm970 = vcmask 662528
      %v971 = vsel %vm970, %v965, %v967
      %v972 = vsel %vm970, %v967, %v969
      %v976 = vadd.f32 %v816, %v971
      %v977 = vadd.f32 %v817, %v972
      %v978 = vadd.f32 %v818, %v969
      %s979 = scalar_lea.vmem %s158, 38
      %v980 = vld [vmem:[%s979] ss:$8 sm:$0x3]
      %v982 = vlaneseq
      %v983 = vshrl.u32 %v982, 7
      %v984 = vsub.s32 0, %v983
      %v985 = vrot.slane %v980, %v984
      %v986 = vlaneseq
      %v987 = vshrl.u32 %v986, 7
      %v988 = vsub.s32 1, %v987
      %v989 = vrot.slane %v980, %v988
      %990 = vrot.lane.b32.xlu0 %v985, 49
      %v991 = vpop.permute.xlu0 %990
      %992 = vrot.lane.b32.xlu0 %v989, 49
      %v993 = vpop.permute.xlu0 %992
      %vm994 = vcmask 400384
      %v995 = vsel %vm994, %v991, %v993
      %v999 = vmul.f32 %v164, %v991
      %v1000 = vmul.f32 %v165, %v995
      %v1001 = vmul.f32 %v166, %v993
      %1005 = vrot.lane.b32.xlu0 %v999, 81
      %v1006 = vpop.permute.xlu0 %1005
      %1007 = vrot.lane.b32.xlu0 %v1000, 81
      %v1008 = vpop.permute.xlu0 %1007
      %1009 = vrot.lane.b32.xlu0 %v1001, 81
      %v1010 = vpop.permute.xlu0 %1009
      %v1011 = vsel %vm970, %v1006, %v1008
      %v1012 = vsel %vm970, %v1008, %v1010
      %v1016 = vadd.f32 %v856, %v1011
      %v1017 = vadd.f32 %v857, %v1012
      %v1018 = vadd.f32 %v858, %v1010
      %s1019 = scalar_lea.vmem %s158, 39
      %v1020 = vld [vmem:[%s1019] ss:$8 sm:$0x3]
      %v1022 = vlaneseq
      %v1023 = vshrl.u32 %v1022, 7
      %v1024 = vsub.s32 0, %v1023
      %v1025 = vrot.slane %v1020, %v1024
      %v1026 = vlaneseq
      %v1027 = vshrl.u32 %v1026, 7
      %v1028 = vsub.s32 1, %v1027
      %v1029 = vrot.slane %v1020, %v1028
      %1030 = vrot.lane.b32.xlu0 %v1025, 50
      %v1031 = vpop.permute.xlu0 %1030
      %1032 = vrot.lane.b32.xlu0 %v1029, 50
      %v1033 = vpop.permute.xlu0 %1032
      %vm1034 = vcmask 408576
      %v1035 = vsel %vm1034, %v1031, %v1033
      %v1039 = vmul.f32 %v164, %v1031
      %v1040 = vmul.f32 %v165, %v1035
      %v1041 = vmul.f32 %v166, %v1033
      %1045 = vrot.lane.b32.xlu0 %v1039, 81
      %v1046 = vpop.permute.xlu0 %1045
      %1047 = vrot.lane.b32.xlu0 %v1040, 81
      %v1048 = vpop.permute.xlu0 %1047
      %1049 = vrot.lane.b32.xlu0 %v1041, 81
      %v1050 = vpop.permute.xlu0 %1049
      %v1051 = vsel %vm970, %v1046, %v1048
      %v1052 = vsel %vm970, %v1048, %v1050
      %v1056 = vadd.f32 %v896, %v1051
      %v1057 = vadd.f32 %v897, %v1052
      %v1058 = vadd.f32 %v898, %v1050
      %s1059 = scalar_lea.vmem %s158, 48
      %v1060 = vld [vmem:[%s1059] ss:$8 sm:$0x3]
      %v1062 = vlaneseq
      %v1063 = vshrl.u32 %v1062, 7
      %v1064 = vsub.s32 0, %v1063
      %v1065 = vrot.slane %v1060, %v1064
      %v1066 = vlaneseq
      %v1067 = vshrl.u32 %v1066, 7
      %v1068 = vsub.s32 1, %v1067
      %v1069 = vrot.slane %v1060, %v1068
      %1070 = vrot.lane.b32.xlu0 %v1065, 51
      %v1071 = vpop.permute.xlu0 %1070
      %1072 = vrot.lane.b32.xlu0 %v1069, 51
      %v1073 = vpop.permute.xlu0 %1072
      %vm1074 = vcmask 416768
      %v1075 = vsel %vm1074, %v1071, %v1073
      %v1079 = vmul.f32 %v164, %v1071
      %v1080 = vmul.f32 %v165, %v1075
      %v1081 = vmul.f32 %v166, %v1073
      %1085 = vrot.lane.b32.xlu0 %v1079, 77
      %v1086 = vpop.permute.xlu0 %1085
      %1087 = vrot.lane.b32.xlu0 %v1080, 77
      %v1088 = vpop.permute.xlu0 %1087
      %1089 = vrot.lane.b32.xlu0 %v1081, 77
      %v1090 = vpop.permute.xlu0 %1089
      %vm1091 = vcmask 629760
      %v1092 = vsel %vm1091, %v1086, %v1088
      %v1093 = vsel %vm1091, %v1088, %v1090
      %v1096 = vadd.f32 %v936, %v1092
      %v1097 = vadd.f32 %v937, %v1093
      %s1098 = scalar_lea.vmem %s158, 49
      %v1099 = vld [vmem:[%s1098] ss:$8 sm:$0x3]
      %v1101 = vlaneseq
      %v1102 = vshrl.u32 %v1101, 7
      %v1103 = vsub.s32 0, %v1102
      %v1104 = vrot.slane %v1099, %v1103
      %v1105 = vlaneseq
      %v1106 = vshrl.u32 %v1105, 7
      %v1107 = vsub.s32 1, %v1106
      %v1108 = vrot.slane %v1099, %v1107
      %1109 = vrot.lane.b32.xlu0 %v1104, 52
      %v1110 = vpop.permute.xlu0 %1109
      %1111 = vrot.lane.b32.xlu0 %v1108, 52
      %v1112 = vpop.permute.xlu0 %1111
      %vm1113 = vcmask 424960
      %v1114 = vsel %vm1113, %v1110, %v1112
      %v1118 = vmul.f32 %v164, %v1110
      %v1119 = vmul.f32 %v165, %v1114
      %v1120 = vmul.f32 %v166, %v1112
      %1124 = vrot.lane.b32.xlu0 %v1118, 77
      %v1125 = vpop.permute.xlu0 %1124
      %1126 = vrot.lane.b32.xlu0 %v1119, 77
      %v1127 = vpop.permute.xlu0 %1126
      %1128 = vrot.lane.b32.xlu0 %v1120, 77
      %v1129 = vpop.permute.xlu0 %1128
      %v1130 = vsel %vm1091, %v1125, %v1127
      %v1131 = vsel %vm1091, %v1127, %v1129
      %v1135 = vadd.f32 %v976, %v1130
      %v1136 = vadd.f32 %v977, %v1131
      %v1137 = vadd.f32 %v978, %v1129
      %s1138 = scalar_lea.vmem %s158, 50
      %v1139 = vld [vmem:[%s1138] ss:$8 sm:$0x3]
      %v1141 = vlaneseq
      %v1142 = vshrl.u32 %v1141, 7
      %v1143 = vsub.s32 0, %v1142
      %v1144 = vrot.slane %v1139, %v1143
      %v1145 = vlaneseq
      %v1146 = vshrl.u32 %v1145, 7
      %v1147 = vsub.s32 1, %v1146
      %v1148 = vrot.slane %v1139, %v1147
      %1149 = vrot.lane.b32.xlu0 %v1144, 53
      %v1150 = vpop.permute.xlu0 %1149
      %1151 = vrot.lane.b32.xlu0 %v1148, 53
      %v1152 = vpop.permute.xlu0 %1151
      %vm1153 = vcmask 433152
      %v1154 = vsel %vm1153, %v1150, %v1152
      %v1158 = vmul.f32 %v164, %v1150
      %v1159 = vmul.f32 %v165, %v1154
      %v1160 = vmul.f32 %v166, %v1152
      %1164 = vrot.lane.b32.xlu0 %v1158, 77
      %v1165 = vpop.permute.xlu0 %1164
      %1166 = vrot.lane.b32.xlu0 %v1159, 77
      %v1167 = vpop.permute.xlu0 %1166
      %1168 = vrot.lane.b32.xlu0 %v1160, 77
      %v1169 = vpop.permute.xlu0 %1168
      %v1170 = vsel %vm1091, %v1165, %v1167
      %v1171 = vsel %vm1091, %v1167, %v1169
      %v1175 = vadd.f32 %v1016, %v1170
      %v1176 = vadd.f32 %v1017, %v1171
      %v1177 = vadd.f32 %v1018, %v1169
      %s1178 = scalar_lea.vmem %s158, 51
      %v1179 = vld [vmem:[%s1178] ss:$8 sm:$0x3]
      %v1181 = vlaneseq
      %v1182 = vshrl.u32 %v1181, 7
      %v1183 = vsub.s32 0, %v1182
      %v1184 = vrot.slane %v1179, %v1183
      %v1185 = vlaneseq
      %v1186 = vshrl.u32 %v1185, 7
      %v1187 = vsub.s32 1, %v1186
      %v1188 = vrot.slane %v1179, %v1187
      %1189 = vrot.lane.b32.xlu0 %v1184, 54
      %v1190 = vpop.permute.xlu0 %1189
      %1191 = vrot.lane.b32.xlu0 %v1188, 54
      %v1192 = vpop.permute.xlu0 %1191
      %vm1193 = vcmask 441344
      %v1194 = vsel %vm1193, %v1190, %v1192
      %v1198 = vmul.f32 %v164, %v1190
      %v1199 = vmul.f32 %v165, %v1194
      %v1200 = vmul.f32 %v166, %v1192
      %1204 = vrot.lane.b32.xlu0 %v1198, 77
      %v1205 = vpop.permute.xlu0 %1204
      %1206 = vrot.lane.b32.xlu0 %v1199, 77
      %v1207 = vpop.permute.xlu0 %1206
      %1208 = vrot.lane.b32.xlu0 %v1200, 77
      %v1209 = vpop.permute.xlu0 %1208
      %v1210 = vsel %vm1091, %v1205, %v1207
      %v1211 = vsel %vm1091, %v1207, %v1209
      %v1215 = vadd.f32 %v1056, %v1210
      %v1216 = vadd.f32 %v1057, %v1211
      %v1217 = vadd.f32 %v1058, %v1209
      %s1218 = scalar_lea.vmem %s158, 52
      %v1219 = vld [vmem:[%s1218] ss:$8 sm:$0x3]
      %v1221 = vlaneseq
      %v1222 = vshrl.u32 %v1221, 7
      %v1223 = vsub.s32 0, %v1222
      %v1224 = vrot.slane %v1219, %v1223
      %v1225 = vlaneseq
      %v1226 = vshrl.u32 %v1225, 7
      %v1227 = vsub.s32 1, %v1226
      %v1228 = vrot.slane %v1219, %v1227
      %1229 = vrot.lane.b32.xlu0 %v1224, 64
      %v1230 = vpop.permute.xlu0 %1229
      %1231 = vrot.lane.b32.xlu0 %v1228, 64
      %v1232 = vpop.permute.xlu0 %1231
      %vm1233 = vcmask 523264
      %v1234 = vsel %vm1233, %v1230, %v1232
      %v1238 = vmul.f32 %v164, %v1230
      %v1239 = vmul.f32 %v165, %v1234
      %v1240 = vmul.f32 %v166, %v1232
      %1244 = vrot.lane.b32.xlu0 %v1238, 64
      %v1245 = vpop.permute.xlu0 %1244
      %1246 = vrot.lane.b32.xlu0 %v1239, 64
      %v1247 = vpop.permute.xlu0 %1246
      %1248 = vrot.lane.b32.xlu0 %v1240, 64
      %v1249 = vpop.permute.xlu0 %1248
      %v1250 = vsel %vm1233, %v1245, %v1247
      %v1251 = vsel %vm1233, %v1247, %v1249
      %v1254 = vadd.f32 %v1096, %v1250
      %v1255 = vadd.f32 %v1097, %v1251
      %s1256 = scalar_lea.vmem %s158, 53
      %v1257 = vld [vmem:[%s1256] ss:$8 sm:$0x3]
      %v1259 = vlaneseq
      %v1260 = vshrl.u32 %v1259, 7
      %v1261 = vsub.s32 0, %v1260
      %v1262 = vrot.slane %v1257, %v1261
      %v1263 = vlaneseq
      %v1264 = vshrl.u32 %v1263, 7
      %v1265 = vsub.s32 1, %v1264
      %v1266 = vrot.slane %v1257, %v1265
      %1267 = vrot.lane.b32.xlu0 %v1262, 65
      %v1268 = vpop.permute.xlu0 %1267
      %1269 = vrot.lane.b32.xlu0 %v1266, 65
      %v1270 = vpop.permute.xlu0 %1269
      %vm1271 = vcmask 531456
      %v1272 = vsel %vm1271, %v1268, %v1270
      %v1276 = vmul.f32 %v164, %v1268
      %v1277 = vmul.f32 %v165, %v1272
      %v1278 = vmul.f32 %v166, %v1270
      %1282 = vrot.lane.b32.xlu0 %v1276, 64
      %v1283 = vpop.permute.xlu0 %1282
      %1284 = vrot.lane.b32.xlu0 %v1277, 64
      %v1285 = vpop.permute.xlu0 %1284
      %1286 = vrot.lane.b32.xlu0 %v1278, 64
      %v1287 = vpop.permute.xlu0 %1286
      %v1288 = vsel %vm1233, %v1283, %v1285
      %v1289 = vsel %vm1233, %v1285, %v1287
      %v1293 = vadd.f32 %v1135, %v1288
      %v1294 = vadd.f32 %v1136, %v1289
      %v1295 = vadd.f32 %v1137, %v1287
      %s1296 = scalar_lea.vmem %s158, 54
      %v1297 = vld [vmem:[%s1296] ss:$8 sm:$0x3]
      %v1299 = vlaneseq
      %v1300 = vshrl.u32 %v1299, 7
      %v1301 = vsub.s32 0, %v1300
      %v1302 = vrot.slane %v1297, %v1301
      %v1303 = vlaneseq
      %v1304 = vshrl.u32 %v1303, 7
      %v1305 = vsub.s32 1, %v1304
      %v1306 = vrot.slane %v1297, %v1305
      %1307 = vrot.lane.b32.xlu0 %v1302, 66
      %v1308 = vpop.permute.xlu0 %1307
      %1309 = vrot.lane.b32.xlu0 %v1306, 66
      %v1310 = vpop.permute.xlu0 %1309
      %vm1311 = vcmask 539648
      %v1312 = vsel %vm1311, %v1308, %v1310
      %v1316 = vmul.f32 %v164, %v1308
      %v1317 = vmul.f32 %v165, %v1312
      %v1318 = vmul.f32 %v166, %v1310
      %1322 = vrot.lane.b32.xlu0 %v1316, 64
      %v1323 = vpop.permute.xlu0 %1322
      %1324 = vrot.lane.b32.xlu0 %v1317, 64
      %v1325 = vpop.permute.xlu0 %1324
      %1326 = vrot.lane.b32.xlu0 %v1318, 64
      %v1327 = vpop.permute.xlu0 %1326
      %v1328 = vsel %vm1233, %v1323, %v1325
      %v1329 = vsel %vm1233, %v1325, %v1327
      %v1333 = vadd.f32 %v1175, %v1328
      %v1334 = vadd.f32 %v1176, %v1329
      %v1335 = vadd.f32 %v1177, %v1327
      %s1336 = scalar_lea.vmem %s158, 55
      %v1337 = vld [vmem:[%s1336] ss:$8 sm:$0x3]
      %v1339 = vlaneseq
      %v1340 = vshrl.u32 %v1339, 7
      %v1341 = vsub.s32 0, %v1340
      %v1342 = vrot.slane %v1337, %v1341
      %v1343 = vlaneseq
      %v1344 = vshrl.u32 %v1343, 7
      %v1345 = vsub.s32 1, %v1344
      %v1346 = vrot.slane %v1337, %v1345
      %1347 = vrot.lane.b32.xlu0 %v1342, 67
      %v1348 = vpop.permute.xlu0 %1347
      %1349 = vrot.lane.b32.xlu0 %v1346, 67
      %v1350 = vpop.permute.xlu0 %1349
      %vm1351 = vcmask 547840
      %v1352 = vsel %vm1351, %v1348, %v1350
      %v1356 = vmul.f32 %v164, %v1348
      %v1357 = vmul.f32 %v165, %v1352
      %v1358 = vmul.f32 %v166, %v1350
      %1362 = vrot.lane.b32.xlu0 %v1356, 64
      %v1363 = vpop.permute.xlu0 %1362
      %1364 = vrot.lane.b32.xlu0 %v1357, 64
      %v1365 = vpop.permute.xlu0 %1364
      %1366 = vrot.lane.b32.xlu0 %v1358, 64
      %v1367 = vpop.permute.xlu0 %1366
      %v1368 = vsel %vm1233, %v1363, %v1365
      %v1369 = vsel %vm1233, %v1365, %v1367
      %v1373 = vadd.f32 %v1215, %v1368
      %v1374 = vadd.f32 %v1216, %v1369
      %v1375 = vadd.f32 %v1217, %v1367
      %s1376 = scalar_lea.vmem %s158, 64
      %v1377 = vld [vmem:[%s1376] ss:$8 sm:$0x3]
      %v1379 = vlaneseq
      %v1380 = vshrl.u32 %v1379, 7
      %v1381 = vsub.s32 0, %v1380
      %v1382 = vrot.slane %v1377, %v1381
      %v1383 = vlaneseq
      %v1384 = vshrl.u32 %v1383, 7
      %v1385 = vsub.s32 1, %v1384
      %v1386 = vrot.slane %v1377, %v1385
      %1387 = vrot.lane.b32.xlu0 %v1382, 68
      %v1388 = vpop.permute.xlu0 %1387
      %1389 = vrot.lane.b32.xlu0 %v1386, 68
      %v1390 = vpop.permute.xlu0 %1389
      %vm1391 = vcmask 556032
      %v1392 = vsel %vm1391, %v1388, %v1390
      %v1396 = vmul.f32 %v164, %v1388
      %v1397 = vmul.f32 %v165, %v1392
      %v1398 = vmul.f32 %v166, %v1390
      %1402 = vrot.lane.b32.xlu0 %v1396, 60
      %v1403 = vpop.permute.xlu0 %1402
      %1404 = vrot.lane.b32.xlu0 %v1397, 60
      %v1405 = vpop.permute.xlu0 %1404
      %1406 = vrot.lane.b32.xlu0 %v1398, 60
      %v1407 = vpop.permute.xlu0 %1406
      %vm1408 = vcmask 490496
      %v1409 = vsel %vm1408, %v1403, %v1405
      %v1410 = vsel %vm1408, %v1405, %v1407
      %v1413 = vadd.f32 %v1254, %v1409
      %v1414 = vadd.f32 %v1255, %v1410
      %s1415 = scalar_lea.vmem %s158, 65
      %v1416 = vld [vmem:[%s1415] ss:$8 sm:$0x3]
      %v1418 = vlaneseq
      %v1419 = vshrl.u32 %v1418, 7
      %v1420 = vsub.s32 0, %v1419
      %v1421 = vrot.slane %v1416, %v1420
      %v1422 = vlaneseq
      %v1423 = vshrl.u32 %v1422, 7
      %v1424 = vsub.s32 1, %v1423
      %v1425 = vrot.slane %v1416, %v1424
      %1426 = vrot.lane.b32.xlu0 %v1421, 69
      %v1427 = vpop.permute.xlu0 %1426
      %1428 = vrot.lane.b32.xlu0 %v1425, 69
      %v1429 = vpop.permute.xlu0 %1428
      %vm1430 = vcmask 564224
      %v1431 = vsel %vm1430, %v1427, %v1429
      %v1435 = vmul.f32 %v164, %v1427
      %v1436 = vmul.f32 %v165, %v1431
      %v1437 = vmul.f32 %v166, %v1429
      %1441 = vrot.lane.b32.xlu0 %v1435, 60
      %v1442 = vpop.permute.xlu0 %1441
      %1443 = vrot.lane.b32.xlu0 %v1436, 60
      %v1444 = vpop.permute.xlu0 %1443
      %1445 = vrot.lane.b32.xlu0 %v1437, 60
      %v1446 = vpop.permute.xlu0 %1445
      %v1447 = vsel %vm1408, %v1442, %v1444
      %v1448 = vsel %vm1408, %v1444, %v1446
      %v1452 = vadd.f32 %v1293, %v1447
      %v1453 = vadd.f32 %v1294, %v1448
      %v1454 = vadd.f32 %v1295, %v1446
      %s1455 = scalar_lea.vmem %s158, 66
      %v1456 = vld [vmem:[%s1455] ss:$8 sm:$0x3]
      %v1458 = vlaneseq
      %v1459 = vshrl.u32 %v1458, 7
      %v1460 = vsub.s32 0, %v1459
      %v1461 = vrot.slane %v1456, %v1460
      %v1462 = vlaneseq
      %v1463 = vshrl.u32 %v1462, 7
      %v1464 = vsub.s32 1, %v1463
      %v1465 = vrot.slane %v1456, %v1464
      %1466 = vrot.lane.b32.xlu0 %v1461, 70
      %v1467 = vpop.permute.xlu0 %1466
      %1468 = vrot.lane.b32.xlu0 %v1465, 70
      %v1469 = vpop.permute.xlu0 %1468
      %vm1470 = vcmask 572416
      %v1471 = vsel %vm1470, %v1467, %v1469
      %v1475 = vmul.f32 %v164, %v1467
      %v1476 = vmul.f32 %v165, %v1471
      %v1477 = vmul.f32 %v166, %v1469
      %1481 = vrot.lane.b32.xlu0 %v1475, 60
      %v1482 = vpop.permute.xlu0 %1481
      %1483 = vrot.lane.b32.xlu0 %v1476, 60
      %v1484 = vpop.permute.xlu0 %1483
      %1485 = vrot.lane.b32.xlu0 %v1477, 60
      %v1486 = vpop.permute.xlu0 %1485
      %v1487 = vsel %vm1408, %v1482, %v1484
      %v1488 = vsel %vm1408, %v1484, %v1486
      %v1492 = vadd.f32 %v1333, %v1487
      %v1493 = vadd.f32 %v1334, %v1488
      %v1494 = vadd.f32 %v1335, %v1486
      %s1495 = scalar_lea.vmem %s158, 67
      %v1496 = vld [vmem:[%s1495] ss:$8 sm:$0x3]
      %v1498 = vlaneseq
      %v1499 = vshrl.u32 %v1498, 7
      %v1500 = vsub.s32 0, %v1499
      %v1501 = vrot.slane %v1496, %v1500
      %v1502 = vlaneseq
      %v1503 = vshrl.u32 %v1502, 7
      %v1504 = vsub.s32 1, %v1503
      %v1505 = vrot.slane %v1496, %v1504
      %1506 = vrot.lane.b32.xlu0 %v1501, 80
      %v1507 = vpop.permute.xlu0 %1506
      %1508 = vrot.lane.b32.xlu0 %v1505, 80
      %v1509 = vpop.permute.xlu0 %1508
      %vm1510 = vcmask 654336
      %v1511 = vsel %vm1510, %v1507, %v1509
      %v1515 = vmul.f32 %v164, %v1507
      %v1516 = vmul.f32 %v165, %v1511
      %v1517 = vmul.f32 %v166, %v1509
      %1521 = vrot.lane.b32.xlu0 %v1515, 51
      %v1522 = vpop.permute.xlu0 %1521
      %1523 = vrot.lane.b32.xlu0 %v1516, 51
      %v1524 = vpop.permute.xlu0 %1523
      %1525 = vrot.lane.b32.xlu0 %v1517, 51
      %v1526 = vpop.permute.xlu0 %1525
      %v1527 = vsel %vm1074, %v1522, %v1524
      %v1528 = vsel %vm1074, %v1524, %v1526
      %v1532 = vadd.f32 %v1373, %v1527
      %v1533 = vadd.f32 %v1374, %v1528
      %v1534 = vadd.f32 %v1375, %v1526
      %s1535 = scalar_lea.vmem %s158, 68
      %v1536 = vld [vmem:[%s1535] ss:$8 sm:$0x3]
      %v1538 = vlaneseq
      %v1539 = vshrl.u32 %v1538, 7
      %v1540 = vsub.s32 0, %v1539
      %v1541 = vrot.slane %v1536, %v1540
      %v1542 = vlaneseq
      %v1543 = vshrl.u32 %v1542, 7
      %v1544 = vsub.s32 1, %v1543
      %v1545 = vrot.slane %v1536, %v1544
      %1546 = vrot.lane.b32.xlu0 %v1541, 81
      %v1547 = vpop.permute.xlu0 %1546
      %1548 = vrot.lane.b32.xlu0 %v1545, 81
      %v1549 = vpop.permute.xlu0 %1548
      %v1550 = vsel %vm970, %v1547, %v1549
      %v1554 = vmul.f32 %v164, %v1547
      %v1555 = vmul.f32 %v165, %v1550
      %v1556 = vmul.f32 %v166, %v1549
      %1560 = vrot.lane.b32.xlu0 %v1554, 47
      %v1561 = vpop.permute.xlu0 %1560
      %1562 = vrot.lane.b32.xlu0 %v1555, 47
      %v1563 = vpop.permute.xlu0 %1562
      %1564 = vrot.lane.b32.xlu0 %v1556, 47
      %v1565 = vpop.permute.xlu0 %1564
      %vm1566 = vcmask 384000
      %v1567 = vsel %vm1566, %v1561, %v1563
      %v1568 = vsel %vm1566, %v1563, %v1565
      %v1571 = vadd.f32 %v1413, %v1567
      %v1572 = vadd.f32 %v1414, %v1568
      %s1573 = scalar_lea.vmem %s158, 69
      %v1574 = vld [vmem:[%s1573] ss:$8 sm:$0x3]
      %v1576 = vlaneseq
      %v1577 = vshrl.u32 %v1576, 7
      %v1578 = vsub.s32 0, %v1577
      %v1579 = vrot.slane %v1574, %v1578
      %v1580 = vlaneseq
      %v1581 = vshrl.u32 %v1580, 7
      %v1582 = vsub.s32 1, %v1581
      %v1583 = vrot.slane %v1574, %v1582
      %1584 = vrot.lane.b32.xlu0 %v1579, 82
      %v1585 = vpop.permute.xlu0 %1584
      %1586 = vrot.lane.b32.xlu0 %v1583, 82
      %v1587 = vpop.permute.xlu0 %1586
      %vm1588 = vcmask 670720
      %v1589 = vsel %vm1588, %v1585, %v1587
      %v1593 = vmul.f32 %v164, %v1585
      %v1594 = vmul.f32 %v165, %v1589
      %v1595 = vmul.f32 %v166, %v1587
      %1599 = vrot.lane.b32.xlu0 %v1593, 47
      %v1600 = vpop.permute.xlu0 %1599
      %1601 = vrot.lane.b32.xlu0 %v1594, 47
      %v1602 = vpop.permute.xlu0 %1601
      %1603 = vrot.lane.b32.xlu0 %v1595, 47
      %v1604 = vpop.permute.xlu0 %1603
      %v1605 = vsel %vm1566, %v1600, %v1602
      %v1606 = vsel %vm1566, %v1602, %v1604
      %v1610 = vadd.f32 %v1452, %v1605
      %v1611 = vadd.f32 %v1453, %v1606
      %v1612 = vadd.f32 %v1454, %v1604
      %s1613 = scalar_lea.vmem %s158, 70
      %v1614 = vld [vmem:[%s1613] ss:$8 sm:$0x3]
      %v1616 = vlaneseq
      %v1617 = vshrl.u32 %v1616, 7
      %v1618 = vsub.s32 0, %v1617
      %v1619 = vrot.slane %v1614, %v1618
      %v1620 = vlaneseq
      %v1621 = vshrl.u32 %v1620, 7
      %v1622 = vsub.s32 1, %v1621
      %v1623 = vrot.slane %v1614, %v1622
      %1624 = vrot.lane.b32.xlu0 %v1619, 83
      %v1625 = vpop.permute.xlu0 %1624
      %1626 = vrot.lane.b32.xlu0 %v1623, 83
      %v1627 = vpop.permute.xlu0 %1626
      %vm1628 = vcmask 678912
      %v1629 = vsel %vm1628, %v1625, %v1627
      %v1633 = vmul.f32 %v164, %v1625
      %v1634 = vmul.f32 %v165, %v1629
      %v1635 = vmul.f32 %v166, %v1627
      %1639 = vrot.lane.b32.xlu0 %v1633, 47
      %v1640 = vpop.permute.xlu0 %1639
      %1641 = vrot.lane.b32.xlu0 %v1634, 47
      %v1642 = vpop.permute.xlu0 %1641
      %1643 = vrot.lane.b32.xlu0 %v1635, 47
      %v1644 = vpop.permute.xlu0 %1643
      %v1645 = vsel %vm1566, %v1640, %v1642
      %v1646 = vsel %vm1566, %v1642, %v1644
      %v1650 = vadd.f32 %v1492, %v1645
      %v1651 = vadd.f32 %v1493, %v1646
      %v1652 = vadd.f32 %v1494, %v1644
      %s1653 = scalar_lea.vmem %s158, 71
      %v1654 = vld [vmem:[%s1653] ss:$8 sm:$0x3]
      %v1656 = vlaneseq
      %v1657 = vshrl.u32 %v1656, 7
      %v1658 = vsub.s32 0, %v1657
      %v1659 = vrot.slane %v1654, %v1658
      %v1660 = vlaneseq
      %v1661 = vshrl.u32 %v1660, 7
      %v1662 = vsub.s32 1, %v1661
      %v1663 = vrot.slane %v1654, %v1662
      %1664 = vrot.lane.b32.xlu0 %v1659, 84
      %v1665 = vpop.permute.xlu0 %1664
      %1666 = vrot.lane.b32.xlu0 %v1663, 84
      %v1667 = vpop.permute.xlu0 %1666
      %vm1668 = vcmask 687104
      %v1669 = vsel %vm1668, %v1665, %v1667
      %v1673 = vmul.f32 %v164, %v1665
      %v1674 = vmul.f32 %v165, %v1669
      %v1675 = vmul.f32 %v166, %v1667
      %1679 = vrot.lane.b32.xlu0 %v1673, 47
      %v1680 = vpop.permute.xlu0 %1679
      %1681 = vrot.lane.b32.xlu0 %v1674, 47
      %v1682 = vpop.permute.xlu0 %1681
      %1683 = vrot.lane.b32.xlu0 %v1675, 47
      %v1684 = vpop.permute.xlu0 %1683
      %v1685 = vsel %vm1566, %v1680, %v1682
      %v1686 = vsel %vm1566, %v1682, %v1684
      %v1690 = vadd.f32 %v1532, %v1685
      %v1691 = vadd.f32 %v1533, %v1686
      %v1692 = vadd.f32 %v1534, %v1684
      %s1693 = scalar_lea.vmem %s158, 80
      %v1694 = vld [vmem:[%s1693] ss:$8 sm:$0x3]
      %v1696 = vlaneseq
      %v1697 = vshrl.u32 %v1696, 7
      %v1698 = vsub.s32 0, %v1697
      %v1699 = vrot.slane %v1694, %v1698
      %v1700 = vlaneseq
      %v1701 = vshrl.u32 %v1700, 7
      %v1702 = vsub.s32 1, %v1701
      %v1703 = vrot.slane %v1694, %v1702
      %1704 = vrot.lane.b32.xlu0 %v1699, 85
      %v1705 = vpop.permute.xlu0 %1704
      %1706 = vrot.lane.b32.xlu0 %v1703, 85
      %v1707 = vpop.permute.xlu0 %1706
      %vm1708 = vcmask 695296
      %v1709 = vsel %vm1708, %v1705, %v1707
      %v1713 = vmul.f32 %v164, %v1705
      %v1714 = vmul.f32 %v165, %v1709
      %v1715 = vmul.f32 %v166, %v1707
      %1719 = vrot.lane.b32.xlu0 %v1713, 43
      %v1720 = vpop.permute.xlu0 %1719
      %1721 = vrot.lane.b32.xlu0 %v1714, 43
      %v1722 = vpop.permute.xlu0 %1721
      %1723 = vrot.lane.b32.xlu0 %v1715, 43
      %v1724 = vpop.permute.xlu0 %1723
      %vm1725 = vcmask 351232
      %v1726 = vsel %vm1725, %v1720, %v1722
      %v1727 = vsel %vm1725, %v1722, %v1724
      %v1730 = vadd.f32 %v1571, %v1726
      %v1731 = vadd.f32 %v1572, %v1727
      %s1732 = scalar_lea.vmem %s158, 81
      %v1733 = vld [vmem:[%s1732] ss:$8 sm:$0x3]
      %v1735 = vlaneseq
      %v1736 = vshrl.u32 %v1735, 7
      %v1737 = vsub.s32 0, %v1736
      %v1738 = vrot.slane %v1733, %v1737
      %v1739 = vlaneseq
      %v1740 = vshrl.u32 %v1739, 7
      %v1741 = vsub.s32 1, %v1740
      %v1742 = vrot.slane %v1733, %v1741
      %1743 = vrot.lane.b32.xlu0 %v1738, 86
      %v1744 = vpop.permute.xlu0 %1743
      %1745 = vrot.lane.b32.xlu0 %v1742, 86
      %v1746 = vpop.permute.xlu0 %1745
      %vm1747 = vcmask 703488
      %v1748 = vsel %vm1747, %v1744, %v1746
      %v1752 = vmul.f32 %v164, %v1744
      %v1753 = vmul.f32 %v165, %v1748
      %v1754 = vmul.f32 %v166, %v1746
      %1758 = vrot.lane.b32.xlu0 %v1752, 43
      %v1759 = vpop.permute.xlu0 %1758
      %1760 = vrot.lane.b32.xlu0 %v1753, 43
      %v1761 = vpop.permute.xlu0 %1760
      %1762 = vrot.lane.b32.xlu0 %v1754, 43
      %v1763 = vpop.permute.xlu0 %1762
      %v1764 = vsel %vm1725, %v1759, %v1761
      %v1765 = vsel %vm1725, %v1761, %v1763
      %v1769 = vadd.f32 %v1610, %v1764
      %v1770 = vadd.f32 %v1611, %v1765
      %v1771 = vadd.f32 %v1612, %v1763
      %s1772 = scalar_lea.vmem %s158, 82
      %v1773 = vld [vmem:[%s1772] ss:$8 sm:$0x3]
      %v1775 = vlaneseq
      %v1776 = vshrl.u32 %v1775, 7
      %v1777 = vsub.s32 0, %v1776
      %v1778 = vrot.slane %v1773, %v1777
      %v1779 = vlaneseq
      %v1780 = vshrl.u32 %v1779, 7
      %v1781 = vsub.s32 1, %v1780
      %v1782 = vrot.slane %v1773, %v1781
      %1783 = vrot.lane.b32.xlu0 %v1778, 96
      %v1784 = vpop.permute.xlu0 %1783
      %1785 = vrot.lane.b32.xlu0 %v1782, 96
      %v1786 = vpop.permute.xlu0 %1785
      %vm1787 = vcmask 785408
      %v1788 = vsel %vm1787, %v1784, %v1786
      %v1792 = vmul.f32 %v164, %v1784
      %v1793 = vmul.f32 %v165, %v1788
      %v1794 = vmul.f32 %v166, %v1786
      %1798 = vrot.lane.b32.xlu0 %v1792, 34
      %v1799 = vpop.permute.xlu0 %1798
      %1800 = vrot.lane.b32.xlu0 %v1793, 34
      %v1801 = vpop.permute.xlu0 %1800
      %1802 = vrot.lane.b32.xlu0 %v1794, 34
      %v1803 = vpop.permute.xlu0 %1802
      %v1804 = vsel %vm755, %v1799, %v1801
      %v1805 = vsel %vm755, %v1801, %v1803
      %v1809 = vadd.f32 %v1650, %v1804
      %v1810 = vadd.f32 %v1651, %v1805
      %v1811 = vadd.f32 %v1652, %v1803
      %s1812 = scalar_lea.vmem %s158, 83
      %v1813 = vld [vmem:[%s1812] ss:$8 sm:$0x3]
      %v1815 = vlaneseq
      %v1816 = vshrl.u32 %v1815, 7
      %v1817 = vsub.s32 0, %v1816
      %v1818 = vrot.slane %v1813, %v1817
      %v1819 = vlaneseq
      %v1820 = vshrl.u32 %v1819, 7
      %v1821 = vsub.s32 1, %v1820
      %v1822 = vrot.slane %v1813, %v1821
      %1823 = vrot.lane.b32.xlu0 %v1818, 97
      %v1824 = vpop.permute.xlu0 %1823
      %1825 = vrot.lane.b32.xlu0 %v1822, 97
      %v1826 = vpop.permute.xlu0 %1825
      %vm1827 = vcmask 793600
      %v1828 = vsel %vm1827, %v1824, %v1826
      %v1832 = vmul.f32 %v164, %v1824
      %v1833 = vmul.f32 %v165, %v1828
      %v1834 = vmul.f32 %v166, %v1826
      %1838 = vrot.lane.b32.xlu0 %v1832, 34
      %v1839 = vpop.permute.xlu0 %1838
      %1840 = vrot.lane.b32.xlu0 %v1833, 34
      %v1841 = vpop.permute.xlu0 %1840
      %1842 = vrot.lane.b32.xlu0 %v1834, 34
      %v1843 = vpop.permute.xlu0 %1842
      %v1844 = vsel %vm755, %v1839, %v1841
      %v1845 = vsel %vm755, %v1841, %v1843
      %v1849 = vadd.f32 %v1690, %v1844
      %v1850 = vadd.f32 %v1691, %v1845
      %v1851 = vadd.f32 %v1692, %v1843
      %s1852 = scalar_lea.vmem %s158, 84
      %v1853 = vld [vmem:[%s1852] ss:$8 sm:$0x3]
      %v1855 = vlaneseq
      %v1856 = vshrl.u32 %v1855, 7
      %v1857 = vsub.s32 0, %v1856
      %v1858 = vrot.slane %v1853, %v1857
      %v1859 = vlaneseq
      %v1860 = vshrl.u32 %v1859, 7
      %v1861 = vsub.s32 1, %v1860
      %v1862 = vrot.slane %v1853, %v1861
      %1863 = vrot.lane.b32.xlu0 %v1858, 98
      %v1864 = vpop.permute.xlu0 %1863
      %1865 = vrot.lane.b32.xlu0 %v1862, 98
      %v1866 = vpop.permute.xlu0 %1865
      %v1867 = vsel %vm691, %v1864, %v1866
      %v1871 = vmul.f32 %v164, %v1864
      %v1872 = vmul.f32 %v165, %v1867
      %v1873 = vmul.f32 %v166, %v1866
      %1877 = vrot.lane.b32.xlu0 %v1871, 30
      %v1878 = vpop.permute.xlu0 %1877
      %1879 = vrot.lane.b32.xlu0 %v1872, 30
      %v1880 = vpop.permute.xlu0 %1879
      %1881 = vrot.lane.b32.xlu0 %v1873, 30
      %v1882 = vpop.permute.xlu0 %1881
      %vm1883 = vcmask 244736
      %v1884 = vsel %vm1883, %v1878, %v1880
      %v1885 = vsel %vm1883, %v1880, %v1882
      %v1888 = vadd.f32 %v1730, %v1884
      %v1889 = vadd.f32 %v1731, %v1885
      %s1890 = scalar_lea.vmem %s158, 85
      %v1891 = vld [vmem:[%s1890] ss:$8 sm:$0x3]
      %v1893 = vlaneseq
      %v1894 = vshrl.u32 %v1893, 7
      %v1895 = vsub.s32 0, %v1894
      %v1896 = vrot.slane %v1891, %v1895
      %v1897 = vlaneseq
      %v1898 = vshrl.u32 %v1897, 7
      %v1899 = vsub.s32 1, %v1898
      %v1900 = vrot.slane %v1891, %v1899
      %1901 = vrot.lane.b32.xlu0 %v1896, 99
      %v1902 = vpop.permute.xlu0 %1901
      %1903 = vrot.lane.b32.xlu0 %v1900, 99
      %v1904 = vpop.permute.xlu0 %1903
      %vm1905 = vcmask 809984
      %v1906 = vsel %vm1905, %v1902, %v1904
      %v1910 = vmul.f32 %v164, %v1902
      %v1911 = vmul.f32 %v165, %v1906
      %v1912 = vmul.f32 %v166, %v1904
      %1916 = vrot.lane.b32.xlu0 %v1910, 30
      %v1917 = vpop.permute.xlu0 %1916
      %1918 = vrot.lane.b32.xlu0 %v1911, 30
      %v1919 = vpop.permute.xlu0 %1918
      %1920 = vrot.lane.b32.xlu0 %v1912, 30
      %v1921 = vpop.permute.xlu0 %1920
      %v1922 = vsel %vm1883, %v1917, %v1919
      %v1923 = vsel %vm1883, %v1919, %v1921
      %v1927 = vadd.f32 %v1769, %v1922
      %v1928 = vadd.f32 %v1770, %v1923
      %v1929 = vadd.f32 %v1771, %v1921
      %s1930 = scalar_lea.vmem %s158, 86
      %v1931 = vld [vmem:[%s1930] ss:$8 sm:$0x3]
      %v1933 = vlaneseq
      %v1934 = vshrl.u32 %v1933, 7
      %v1935 = vsub.s32 0, %v1934
      %v1936 = vrot.slane %v1931, %v1935
      %v1937 = vlaneseq
      %v1938 = vshrl.u32 %v1937, 7
      %v1939 = vsub.s32 1, %v1938
      %v1940 = vrot.slane %v1931, %v1939
      %1941 = vrot.lane.b32.xlu0 %v1936, 100
      %v1942 = vpop.permute.xlu0 %1941
      %1943 = vrot.lane.b32.xlu0 %v1940, 100
      %v1944 = vpop.permute.xlu0 %1943
      %vm1945 = vcmask 818176
      %v1946 = vsel %vm1945, %v1942, %v1944
      %v1950 = vmul.f32 %v164, %v1942
      %v1951 = vmul.f32 %v165, %v1946
      %v1952 = vmul.f32 %v166, %v1944
      %1956 = vrot.lane.b32.xlu0 %v1950, 30
      %v1957 = vpop.permute.xlu0 %1956
      %1958 = vrot.lane.b32.xlu0 %v1951, 30
      %v1959 = vpop.permute.xlu0 %1958
      %1960 = vrot.lane.b32.xlu0 %v1952, 30
      %v1961 = vpop.permute.xlu0 %1960
      %v1962 = vsel %vm1883, %v1957, %v1959
      %v1963 = vsel %vm1883, %v1959, %v1961
      %v1967 = vadd.f32 %v1809, %v1962
      %v1968 = vadd.f32 %v1810, %v1963
      %v1969 = vadd.f32 %v1811, %v1961
      %s1970 = scalar_lea.vmem %s158, 87
      %v1971 = vld [vmem:[%s1970] ss:$8 sm:$0x3]
      %v1973 = vlaneseq
      %v1974 = vshrl.u32 %v1973, 7
      %v1975 = vsub.s32 0, %v1974
      %v1976 = vrot.slane %v1971, %v1975
      %v1977 = vlaneseq
      %v1978 = vshrl.u32 %v1977, 7
      %v1979 = vsub.s32 1, %v1978
      %v1980 = vrot.slane %v1971, %v1979
      %1981 = vrot.lane.b32.xlu0 %v1976, 101
      %v1982 = vpop.permute.xlu0 %1981
      %1983 = vrot.lane.b32.xlu0 %v1980, 101
      %v1984 = vpop.permute.xlu0 %1983
      %vm1985 = vcmask 826368
      %v1986 = vsel %vm1985, %v1982, %v1984
      %v1990 = vmul.f32 %v164, %v1982
      %v1991 = vmul.f32 %v165, %v1986
      %v1992 = vmul.f32 %v166, %v1984
      %1996 = vrot.lane.b32.xlu0 %v1990, 30
      %v1997 = vpop.permute.xlu0 %1996
      %1998 = vrot.lane.b32.xlu0 %v1991, 30
      %v1999 = vpop.permute.xlu0 %1998
      %2000 = vrot.lane.b32.xlu0 %v1992, 30
      %v2001 = vpop.permute.xlu0 %2000
      %v2002 = vsel %vm1883, %v1997, %v1999
      %v2003 = vsel %vm1883, %v1999, %v2001
      %v2007 = vadd.f32 %v1849, %v2002
      %v2008 = vadd.f32 %v1850, %v2003
      %v2009 = vadd.f32 %v1851, %v2001
      %s2010 = scalar_lea.vmem %s158, 96
      %v2011 = vld [vmem:[%s2010] ss:$8 sm:$0x3]
      %v2013 = vlaneseq
      %v2014 = vshrl.u32 %v2013, 7
      %v2015 = vsub.s32 0, %v2014
      %v2016 = vrot.slane %v2011, %v2015
      %v2017 = vlaneseq
      %v2018 = vshrl.u32 %v2017, 7
      %v2019 = vsub.s32 1, %v2018
      %v2020 = vrot.slane %v2011, %v2019
      %2021 = vrot.lane.b32.xlu0 %v2016, 102
      %v2022 = vpop.permute.xlu0 %2021
      %2023 = vrot.lane.b32.xlu0 %v2020, 102
      %v2024 = vpop.permute.xlu0 %2023
      %vm2025 = vcmask 834560
      %v2026 = vsel %vm2025, %v2022, %v2024
      %v2030 = vmul.f32 %v164, %v2022
      %v2031 = vmul.f32 %v165, %v2026
      %v2032 = vmul.f32 %v166, %v2024
      %2036 = vrot.lane.b32.xlu0 %v2030, 26
      %v2037 = vpop.permute.xlu0 %2036
      %2038 = vrot.lane.b32.xlu0 %v2031, 26
      %v2039 = vpop.permute.xlu0 %2038
      %2040 = vrot.lane.b32.xlu0 %v2032, 26
      %v2041 = vpop.permute.xlu0 %2040
      %vm2042 = vcmask 211968
      %v2043 = vsel %vm2042, %v2037, %v2039
      %v2044 = vsel %vm2042, %v2039, %v2041
      %v2047 = vadd.f32 %v1888, %v2043
      %v2048 = vadd.f32 %v1889, %v2044
      %2052 = vrot.lane.b32.xlu0 %v1927, 127
      %v2053 = vpop.permute.xlu0 %2052
      %2054 = vrot.lane.b32.xlu0 %v1928, 127
      %v2055 = vpop.permute.xlu0 %2054
      %2056 = vrot.lane.b32.xlu0 %v1929, 127
      %v2057 = vpop.permute.xlu0 %2056
      %vm2058 = vcmask 1039360
      %v2059 = vsel %vm2058, %v2053, %v2055
      %v2060 = vsel %vm2058, %v2055, %v2057
      %v2063 = vadd.f32 %v2047, %v2059
      %v2064 = vadd.f32 %v2048, %v2060
      %2068 = vrot.lane.b32.xlu0 %v1967, 126
      %v2069 = vpop.permute.xlu0 %2068
      %2070 = vrot.lane.b32.xlu0 %v1968, 126
      %v2071 = vpop.permute.xlu0 %2070
      %2072 = vrot.lane.b32.xlu0 %v1969, 126
      %v2073 = vpop.permute.xlu0 %2072
      %vm2074 = vcmask 1031168
      %v2075 = vsel %vm2074, %v2069, %v2071
      %v2076 = vsel %vm2074, %v2071, %v2073
      %v2079 = vadd.f32 %v2063, %v2075
      %v2080 = vadd.f32 %v2064, %v2076
      %2084 = vrot.lane.b32.xlu0 %v2007, 125
      %v2085 = vpop.permute.xlu0 %2084
      %2086 = vrot.lane.b32.xlu0 %v2008, 125
      %v2087 = vpop.permute.xlu0 %2086
      %2088 = vrot.lane.b32.xlu0 %v2009, 125
      %v2089 = vpop.permute.xlu0 %2088
      %vm2090 = vcmask 1022976
      %v2091 = vsel %vm2090, %v2085, %v2087
      %v2092 = vsel %vm2090, %v2087, %v2089
      %v2095 = vadd.f32 %v2079, %v2091
      %v2096 = vadd.f32 %v2080, %v2092
      %2097 = vst [vmem:[%s163] sm:$0xff] %v2095
      %2098 = vst [vmem:[%s163 + $0x8] sm:$0xff] %v2096
      %p2099 = scmp.lt.s32.totalorder %s13, 1
      %s2100 = scalar_select %p2099, %s13, 1
      %s2101 = smul.addr %s2100, 2
      %s2102 = smul.addr %s2101, 8
      %s2103 = scalar_lea.vmem %s2, %s2102
      // Predicated region
      $region29: #{involution2d_forward.1} parent=27 // pred_check
        %p2104 = pneg %p83
      $region30: #{involution2d_forward.1} parent=27 // pred_check_branch
        %2106 = sbr.rel (%p2104) target = $region32
      $region31: #{involution2d_forward.1} parent=27 // pred_region
        _
      $region32: #{involution2d_forward.1} parent=27 // pred_fallthru
        _
    $region28: #{involution2d_forward.1} parent=5 // pred_fallthru
      _
    %p2107 = scmp.le.s32.totalorder 2, %s8
    // Predicated region
    $region33: #{involution2d_forward.1} parent=5 // pred_check
      %p2108 = pneg %p2107
    $region34: #{involution2d_forward.1} parent=5 // pred_check_branch
      %2110 = sbr.rel (%p2108) target = $region36
    $region35: #{involution2d_forward.1} parent=5 // pred_region
      %s2111 = ssub.s32 %s8, 2
      // Predicated region
      $region37: #{involution2d_forward.1} parent=35 // pred_check
        %p2112 = pneg %p89
      $region38: #{involution2d_forward.1} parent=35 // pred_check_branch
        %2114 = sbr.rel (%p2112) target = $region40
      $region39: #{involution2d_forward.1} parent=35 // pred_region
        %p2115 = scmp.lt.s32.totalorder %s14, 1
        %s2116 = scalar_select %p2115, %s14, 1
        %s2117 = smul.addr %s2116, 2
        %s2118 = smul.addr %s2117, 8
        %s2119 = scalar_lea.vmem %s2, %s2118
      $region40: #{involution2d_forward.1} parent=35 // pred_fallthru
        _
    $region36: #{involution2d_forward.1} parent=5 // pred_fallthru
      _
  $region6: #{involution2d_forward.1} parent=0 // loop_footer
    %s12 = sadd.s32 1, %s8
  $region7: #{involution2d_forward.1} parent=0 // loop_footer_branch
    %7 = sbr.rel target = $region3
  $region8: #{involution2d_forward.1} parent=0 // loop_exit
    _

</llo_original>
